<compile_context>
chip_gen: v7x
topology: tpu7x:2x2x1
jax: 0.10.0
libtpu: 0.0.40
codegen_flags: <defaults>
</compile_context>

<pallas_src>
import functools
import math

import jax
import jax.numpy as jnp
from jax.experimental import pallas as pl
from jax.experimental.pallas import tpu as pltpu


# ----------------------------- Pallas kernels ------------------------------

def _ln_matmul_kernel(x_ref, g_ref, b_ref, w_ref, bias_ref, o_ref, y_ref,
                      *, eps, nfeat, relu):
    """(optional ReLU)(LayerNorm(x_tile) @ W_tile + bias).

    The LayerNorm (XLU reductions + VPU elementwise + bf16 cast) is computed
    once per row block — at the first output-column tile — into a bf16 VMEM
    scratch `y_ref` and reused for every subsequent N tile of the same rows.
    """
    @pl.when(pl.program_id(1) == 0)
    def _():
        x = x_ref[...]                                        # (tm, D) f32
        mean = jnp.mean(x, axis=-1, keepdims=True)
        diff = x - mean
        # torch.Tensor.std is unbiased (ddof=1); eps is added to std (not var).
        var = jnp.sum(diff * diff, axis=-1, keepdims=True) * (1.0 / (nfeat - 1))
        std = jnp.sqrt(var)
        y = g_ref[...] * diff / (std + eps) + b_ref[...]      # exact divide
        y_ref[...] = y.astype(jnp.bfloat16)

    acc = jnp.dot(y_ref[...], w_ref[...],
                  preferred_element_type=jnp.float32)         # (tm, tn) f32
    acc = acc + bias_ref[...]
    if relu:
        acc = jnp.maximum(acc, 0.0)
    o_ref[...] = acc.astype(o_ref.dtype)                      # bf16 activation out


def _matmul_res_kernel(a_ref, w_ref, bias_ref, res_ref, o_ref, acc_ref, *, relu):
    """Tiled, K-accumulated A @ W + bias (+ReLU) + residual.  bf16 MXU, f32 acc."""
    @pl.when(pl.program_id(2) == 0)
    def _():
        acc_ref[...] = jnp.zeros_like(acc_ref)

    acc_ref[...] += jnp.dot(a_ref[...], w_ref[...],
                            preferred_element_type=jnp.float32)

    @pl.when(pl.program_id(2) == pl.num_programs(2) - 1)
    def _():
        y = acc_ref[...] + bias_ref[...]
        if relu:
            y = jnp.maximum(y, 0.0)
        o_ref[...] = y + res_ref[...]                         # residual add in f32


def _matmul_res_ln_kernel(a_ref, w_ref, bias_ref, res_ref, g_ref, b_ref, o_ref,
                          acc_ref, *, relu, eps, nfeat):
    """Same as _matmul_res_kernel, plus a fused LayerNorm epilogue.

    Only valid when the output tile spans the full feature dimension
    (tn == N), which the wrapper guarantees.  Saves one (M, D) HBM round trip
    for the encoder's final LayerNorm.
    """
    @pl.when(pl.program_id(2) == 0)
    def _():
        acc_ref[...] = jnp.zeros_like(acc_ref)

    acc_ref[...] += jnp.dot(a_ref[...], w_ref[...],
                            preferred_element_type=jnp.float32)

    @pl.when(pl.program_id(2) == pl.num_programs(2) - 1)
    def _():
        y = acc_ref[...] + bias_ref[...]
        if relu:
            y = jnp.maximum(y, 0.0)
        z = y + res_ref[...]                                  # residual stream, f32
        mean = jnp.mean(z, axis=-1, keepdims=True)
        diff = z - mean
        var = jnp.sum(diff * diff, axis=-1, keepdims=True) * (1.0 / (nfeat - 1))
        std = jnp.sqrt(var)
        o_ref[...] = g_ref[...] * diff / (std + eps) + b_ref[...]


def _attn_kernel(qrows_ref, kv_ref, mask_ref, o_ref, *, n_heads, d_k, scale):
    """Multi-head attention for one (batch, q-block) grid step.

    qrows_ref: (1, tq, 3D) bf16 — the q-row block of the fused QKV slab.
    kv_ref:    (1, S, 3D)  bf16 — the full-sequence slab (K/V thirds are read).
    The additive mask bias is computed once per grid step; per-head outputs are
    written straight into the output block (no concatenate, one head's
    intermediates live at a time); q@k^T contracts last dims via dot_general
    (no explicit transpose).
    """
    D = n_heads * d_k
    S = kv_ref.shape[1]
    tq = o_ref.shape[1]
    mbias = jnp.where(mask_ref[0] == 0.0, jnp.float32(-1e9), jnp.float32(0.0))
    mbias = jnp.broadcast_to(mbias, (tq, S))                  # hoisted broadcast

    for hh in range(n_heads):                                 # static unroll
        lo = hh * d_k
        q = qrows_ref[0, :, lo:lo + d_k]                      # (tq, dk) bf16
        k = kv_ref[0, :, D + lo:D + lo + d_k]                 # (S, dk)  bf16
        v = kv_ref[0, :, 2 * D + lo:2 * D + lo + d_k]         # (S, dk)  bf16
        s = jax.lax.dot_general(q, k, (((1,), (1,)), ((), ())),
                                preferred_element_type=jnp.float32)
        s = s * scale + mbias                                 # masked_fill(mask==0,-1e9)
        s = s - jnp.max(s, axis=-1, keepdims=True)
        p = jnp.exp(s)
        p = p * pl.reciprocal(jnp.sum(p, axis=-1, keepdims=True), approx=True)
        o = jnp.dot(p.astype(jnp.bfloat16), v,
                    preferred_element_type=jnp.float32)       # (tq, dk) f32
        o_ref[0, :, lo:lo + d_k] = o.astype(o_ref.dtype)      # incremental store


def _layernorm_kernel(x_ref, g_ref, b_ref, o_ref, *, eps, nfeat):
    x = x_ref[...]
    mean = jnp.mean(x, axis=-1, keepdims=True)
    diff = x - mean
    var = jnp.sum(diff * diff, axis=-1, keepdims=True) * (1.0 / (nfeat - 1))
    std = jnp.sqrt(var)
    o_ref[...] = g_ref[...] * diff / (std + eps) + b_ref[...]


# ----------------------------- wrappers -------------------------------------

_VMEM_LIMIT = 32 * 1024 * 1024  # >= default scoped limit on v5e/v6e/v7x


def _pick_tile(dim, desired, mult):
    """Largest divisor of `dim` that is <= `desired` and a multiple of `mult`
    (TPU sublane/lane alignment).  Falls back to the full dim only when no
    aligned divisor exists (never produces an unaligned partial tile)."""
    if dim <= desired:
        return dim
    t = desired - (desired % mult)
    while t >= mult:
        if dim % t == 0:
            return t
        t -= mult
    return dim


def ln_matmul(x2d, g, b, w_bf16, bias, *, relu=False, eps=1e-6, tm=256, tn=256):
    """out = (optional ReLU)(LayerNorm(x) @ W + bias), tiled over (M, N).

    Output is bf16 (it only ever feeds another MXU matmul); LN statistics and
    the bias/ReLU epilogue are f32.
    """
    M, D = x2d.shape
    N = w_bf16.shape[1]
    tm = _pick_tile(M, tm, 8)
    tn = _pick_tile(N, tn, 128)
    return pl.pallas_call(
        functools.partial(_ln_matmul_kernel, eps=eps, nfeat=D, relu=relu),
        out_shape=jax.ShapeDtypeStruct((M, N), jnp.bfloat16),
        grid=(M // tm, N // tn),
        in_specs=[pl.BlockSpec((tm, D), lambda i, j: (i, 0)),
                  pl.BlockSpec((1, D), lambda i, j: (0, 0)),
                  pl.BlockSpec((1, D), lambda i, j: (0, 0)),
                  pl.BlockSpec((D, tn), lambda i, j: (0, j)),
                  pl.BlockSpec((1, tn), lambda i, j: (0, j))],
        out_specs=pl.BlockSpec((tm, tn), lambda i, j: (i, j)),
        scratch_shapes=[pltpu.VMEM((tm, D), jnp.bfloat16)],   # hoisted LN(x) block
        compiler_params=pltpu.CompilerParams(
            dimension_semantics=("parallel", "arbitrary"),    # j carries LN scratch
            vmem_limit_bytes=_VMEM_LIMIT),
    )(x2d, g.reshape(1, D), b.reshape(1, D), w_bf16, bias.reshape(1, N))


def matmul_residual(a2d, w_bf16, bias, res2d, *, relu=False, final_ln=None,
                    eps=1e-6, tm=256, tn=256, tk=512):
    """out = (optional ReLU)(A @ W + bias) + residual, tiled over (M, N, K).

    A is bf16 (activation), residual/output are f32.  If `final_ln=(gamma, beta)`
    is given and the output tile spans the full feature dim, a LayerNorm epilogue
    is fused in; otherwise a separate LayerNorm kernel is applied afterwards.
    """
    M, K = a2d.shape
    N = w_bf16.shape[1]
    tm = _pick_tile(M, tm, 8)
    tn = _pick_tile(N, tn, 128)
    tk = _pick_tile(K, tk, 128)
    grid = (M // tm, N // tn, K // tk)
    base_specs = [pl.BlockSpec((tm, tk), lambda i, j, k: (i, k)),
                  pl.BlockSpec((tk, tn), lambda i, j, k: (k, j)),
                  pl.BlockSpec((1, tn), lambda i, j, k: (0, j)),
                  pl.BlockSpec((tm, tn), lambda i, j, k: (i, j))]
    out_spec = pl.BlockSpec((tm, tn), lambda i, j, k: (i, j))
    cparams = pltpu.CompilerParams(
        dimension_semantics=("parallel", "parallel", "arbitrary"),
        vmem_limit_bytes=_VMEM_LIMIT)

    if final_ln is not None and tn == N:
        gamma, beta = final_ln
        return pl.pallas_call(
            functools.partial(_matmul_res_ln_kernel, relu=relu, eps=eps, nfeat=N),
            out_shape=jax.ShapeDtypeStruct((M, N), jnp.float32),
            grid=grid,
            in_specs=base_specs + [pl.BlockSpec((1, tn), lambda i, j, k: (0, j)),
                                   pl.BlockSpec((1, tn), lambda i, j, k: (0, j))],
            out_specs=out_spec,
            scratch_shapes=[pltpu.VMEM((tm, tn), jnp.float32)],
            compiler_params=cparams,
        )(a2d, w_bf16, bias.reshape(1, N), res2d,
          gamma.reshape(1, N), beta.reshape(1, N))

    out = pl.pallas_call(
        functools.partial(_matmul_res_kernel, relu=relu),
        out_shape=jax.ShapeDtypeStruct((M, N), jnp.float32),
        grid=grid,
        in_specs=base_specs,
        out_specs=out_spec,
        scratch_shapes=[pltpu.VMEM((tm, tn), jnp.float32)],
        compiler_params=cparams,
    )(a2d, w_bf16, bias.reshape(1, N), res2d)
    if final_ln is not None:
        # Couldn't fuse (output tile narrower than the feature dim).
        out = layer_norm(out, final_ln[0], final_ln[1], eps=eps)
    return out


def attention(qkv, mask, n_heads, *, tq=256):
    """qkv: (B, S, 3D) bf16 fused slab; mask: (B, 1, S) f32.  Returns (B, S, D) bf16.

    Grid = (batch, q-block); K/V come from a full-sequence slab that stays
    resident across q blocks, so the live score matrix is only (tq, S).
    """
    B, S, threeD = qkv.shape
    D = threeD // 3
    d_k = D // n_heads
    scale = 1.0 / math.sqrt(d_k)
    tq = _pick_tile(S, tq, 8)
    nq = S // tq
    return pl.pallas_call(
        functools.partial(_attn_kernel, n_heads=n_heads, d_k=d_k, scale=scale),
        out_shape=jax.ShapeDtypeStruct((B, S, D), jnp.bfloat16),
        grid=(B, nq),
        in_specs=[pl.BlockSpec((1, tq, threeD), lambda b, qi: (b, qi, 0)),  # q rows
                  pl.BlockSpec((1, S, threeD), lambda b, qi: (b, 0, 0)),    # K/V (resident)
                  pl.BlockSpec((1, 1, S), lambda b, qi: (b, 0, 0))],
        out_specs=pl.BlockSpec((1, tq, D), lambda b, qi: (b, qi, 0)),
        compiler_params=pltpu.CompilerParams(
            dimension_semantics=("parallel", "parallel"),
            vmem_limit_bytes=_VMEM_LIMIT),
    )(qkv, qkv, mask)


def layer_norm(x2d, g, b, *, eps=1e-6, tm=256):
    M, D = x2d.shape
    tm = _pick_tile(M, tm, 8)
    return pl.pallas_call(
        functools.partial(_layernorm_kernel, eps=eps, nfeat=D),
        out_shape=jax.ShapeDtypeStruct((M, D), jnp.float32),
        grid=(M // tm,),
        in_specs=[pl.BlockSpec((tm, D), lambda i: (i, 0)),
                  pl.BlockSpec((1, D), lambda i: (0, 0)),
                  pl.BlockSpec((1, D), lambda i: (0, 0))],
        out_specs=pl.BlockSpec((tm, D), lambda i: (i, 0)),
        compiler_params=pltpu.CompilerParams(dimension_semantics=("parallel",)),
    )(x2d, g.reshape(1, D), b.reshape(1, D))


# ----------------------------- model forward --------------------------------

def encoder_layer(x2, mask, p, h, B, S, final_ln=None):
    D = x2.shape[-1]
    # sublayer 1: x + SelfAttn(LN1(x))   (LN fused into the QKV projection)
    qkv = ln_matmul(x2, p["ln1_a"], p["ln1_b"], p["w_qkv"], p["b_qkv"])     # bf16
    att = attention(qkv.reshape(B, S, 3 * D), mask, h)                      # bf16
    x2 = matmul_residual(att.reshape(B * S, D), p["wo"], p["bo"], x2)       # f32
    # sublayer 2: x + FFN(LN2(x))  (LN+W1+bias+ReLU fused; W2+residual(+final LN) fused)
    hmid = ln_matmul(x2, p["ln2_a"], p["ln2_b"], p["w1"], p["b1"], relu=True)
    x2 = matmul_residual(hmid, p["w2"], p["b2"], x2, final_ln=final_ln)
    return x2


@functools.partial(jax.jit, static_argnames=("h",))
def encoder_forward(x, mask, params, h):
    B, S, D = x.shape
    x2 = x.reshape(B * S, D)
    layers = params["layers"]
    for li, p in enumerate(layers):
        fl = (params["norm_a"], params["norm_b"]) if li == len(layers) - 1 else None
        x2 = encoder_layer(x2, mask, p, h, B, S, final_ln=fl)
    if not layers:
        x2 = layer_norm(x2, params["norm_a"], params["norm_b"])
    return x2.reshape(B, S, D)


# ----------------------------- param init -----------------------------------

def init_params(key, n_layers, d_model, d_ff):
    """Weights are stored pre-fused (QKV concat) and pre-cast to bf16; biases,
    LayerNorm params and the residual stream stay f32."""
    layers = []
    for _ in range(n_layers):
        keys = jax.random.split(key, 7)
        key = keys[0]
        wq = 0.02 * jax.random.normal(keys[1], (d_model, d_model), jnp.float32)
        wk = 0.02 * jax.random.normal(keys[2], (d_model, d_model), jnp.float32)
        wv = 0.02 * jax.random.normal(keys[3], (d_model, d_model), jnp.float32)
        wo = 0.02 * jax.random.normal(keys[4], (d_model, d_model), jnp.float32)
        w1 = 0.02 * jax.random.normal(keys[5], (d_model, d_ff), jnp.float32)
        w2 = 0.02 * jax.random.normal(keys[6], (d_ff, d_model), jnp.float32)
        layers.append({
            "w_qkv": jnp.concatenate([wq, wk, wv], axis=1).astype(jnp.bfloat16),
            "b_qkv": jnp.zeros((3 * d_model,), jnp.float32),
            "wo": wo.astype(jnp.bfloat16),
            "bo": jnp.zeros((d_model,), jnp.float32),
            "w1": w1.astype(jnp.bfloat16),
            "b1": jnp.zeros((d_ff,), jnp.float32),
            "w2": w2.astype(jnp.bfloat16),
            "b2": jnp.zeros((d_model,), jnp.float32),
            "ln1_a": jnp.ones((d_model,), jnp.float32),
            "ln1_b": jnp.zeros((d_model,), jnp.float32),
            "ln2_a": jnp.ones((d_model,), jnp.float32),
            "ln2_b": jnp.zeros((d_model,), jnp.float32),
        })
    return {
        "layers": layers,
        "norm_a": jnp.ones((d_model,), jnp.float32),
        "norm_b": jnp.zeros((d_model,), jnp.float32),
    }


# ----------------------------- pure-JAX reference ----------------------------

def _reference_forward(x, mask, params, h):
    def ln(t, a, b, eps=1e-6):
        mean = t.mean(-1, keepdims=True)
        std = jnp.sqrt(((t - mean) ** 2).sum(-1, keepdims=True) / (t.shape[-1] - 1))
        return a * (t - mean) / (std + eps) + b

    B, S, D = x.shape
    dk = D // h
    for p in params["layers"]:
        y = ln(x, p["ln1_a"], p["ln1_b"])
        qkv = y @ p["w_qkv"].astype(jnp.float32) + p["b_qkv"]
        q, k, v = jnp.split(qkv, 3, axis=-1)
        def split(t):
            return t.reshape(B, S, h, dk).transpose(0, 2, 1, 3)
        q, k, v = split(q), split(k), split(v)
        s = (q @ k.transpose(0, 1, 3, 2)) / math.sqrt(dk)
        s = jnp.where(mask[:, None, :, :] == 0.0, -1e9, s)
        att = (jax.nn.softmax(s, axis=-1) @ v).transpose(0, 2, 1, 3).reshape(B, S, D)
        x = x + att @ p["wo"].astype(jnp.float32) + p["bo"]
        y = ln(x, p["ln2_a"], p["ln2_b"])
        hmid = jax.nn.relu(y @ p["w1"].astype(jnp.float32) + p["b1"])
        x = x + hmid @ p["w2"].astype(jnp.float32) + p["b2"]
    return ln(x, params["norm_a"], params["norm_b"])


# ----------------------------- main ------------------------------------------

if __name__ == "__main__":
    B, S, D, H, DFF, NLAYERS = 2, 8, 32, 4, 64, 2

    key = jax.random.PRNGKey(0)
    kx, kp = jax.random.split(key)
    x = jax.random.normal(kx, (B, S, D), jnp.float32)

    # src mask: (B, 1, S), 1.0 = attend, 0.0 = masked (last position of batch 1)
    mask = jnp.ones((B, 1, S), jnp.float32)
    mask = mask.at[1, 0, S - 1].set(0.0)

    params = init_params(kp, NLAYERS, D, DFF)

    out = encoder_forward(x, mask, params, h=H)
    out = jax.block_until_ready(out)

    assert out.shape == (B, S, D) and out.dtype == jnp.float32
    assert bool(jnp.all(jnp.isfinite(out)))
    ref = _reference_forward(x, mask, params, H)
    # bf16 inter-kernel activations + bf16 MXU + approx softmax reciprocal tol
    assert float(jnp.max(jnp.abs(out - ref))) < 5e-2
    print("KERNEL_OK")
</pallas_src>

<mosaic_0001>
module attributes {stable_mosaic.version = 11 : i64} {
  func.func @_ln_matmul_kernel(%arg0: i32, %arg1: i32, %arg2: memref<16x32xf32, #tpu.memory_space<vmem>>, %arg3: memref<1x32xf32, #tpu.memory_space<vmem>>, %arg4: memref<1x32xf32, #tpu.memory_space<vmem>>, %arg5: memref<32x64xbf16, #tpu.memory_space<vmem>>, %arg6: memref<1x64xf32, #tpu.memory_space<vmem>>, %arg7: memref<16x64xbf16, #tpu.memory_space<vmem>>, %arg8: memref<16x32xbf16, #tpu.memory_space<vmem>>) attributes {dimension_semantics = [#tpu.dimension_semantics<parallel>, #tpu.dimension_semantics<arbitrary>], iteration_bounds = array<i64: 1, 1>, scalar_prefetch = 0 : i64, scratch_operands = 1 : i64, tpu.core_type = #tpu.core_type<tc>, window_params = [{transform_indices = @transform_0, window_bounds = array<i64: 16, 32>}, {pipeline_mode = #tpu.pipeline_mode<synchronous>, transform_indices = @transform_1, window_bounds = array<i64: 1, 32>}, {pipeline_mode = #tpu.pipeline_mode<synchronous>, transform_indices = @transform_2, window_bounds = array<i64: 1, 32>}, {transform_indices = @transform_3, window_bounds = array<i64: 32, 64>}, {transform_indices = @transform_4, window_bounds = array<i64: 1, 64>}, {transform_indices = @transform_5, window_bounds = array<i64: 16, 64>}]} {
    %c0_i32 = arith.constant 0 : i32
    %0 = arith.cmpi eq, %arg1, %c0_i32 : i32
    %1 = arith.extui %0 : i1 to i32
    %c0_i32_0 = arith.constant 0 : i32
    %2 = arith.cmpi ne, %1, %c0_i32_0 : i32
    scf.if %2 {
      %c0_9 = arith.constant 0 : index
      %c0_10 = arith.constant 0 : index
      %13 = vector.load %arg2[%c0_9, %c0_10] : memref<16x32xf32, #tpu.memory_space<vmem>>, vector<16x32xf32>
      %cst_11 = arith.constant dense<0.000000e+00> : vector<16xf32>
      %14 = vector.multi_reduction <add>, %13, %cst_11 [1] : vector<16x32xf32> to vector<16xf32>
      %15 = vector.shape_cast %14 : vector<16xf32> to vector<16x1xf32>
      %cst_12 = arith.constant 3.200000e+01 : f32
      %16 = vector.broadcast %cst_12 : f32 to vector<16x1xf32>
      %17 = arith.divf %15, %16 : vector<16x1xf32>
      %18 = vector.broadcast %17 : vector<16x1xf32> to vector<16x32xf32>
      %19 = arith.subf %13, %18 : vector<16x32xf32>
      %20 = arith.mulf %19, %19 : vector<16x32xf32>
      %cst_13 = arith.constant dense<0.000000e+00> : vector<16xf32>
      %21 = vector.multi_reduction <add>, %20, %cst_13 [1] : vector<16x32xf32> to vector<16xf32>
      %22 = vector.shape_cast %21 : vector<16xf32> to vector<16x1xf32>
      %cst_14 = arith.constant 0.0322580636 : f32
      %23 = vector.broadcast %cst_14 : f32 to vector<16x1xf32>
      %24 = arith.mulf %22, %23 : vector<16x1xf32>
      %25 = math.sqrt %24 : vector<16x1xf32>
      %c0_15 = arith.constant 0 : index
      %c0_16 = arith.constant 0 : index
      %26 = vector.load %arg3[%c0_15, %c0_16] : memref<1x32xf32, #tpu.memory_space<vmem>>, vector<1x32xf32>
      %27 = vector.broadcast %26 : vector<1x32xf32> to vector<16x32xf32>
      %28 = arith.mulf %27, %19 : vector<16x32xf32>
      %cst_17 = arith.constant 9.99999997E-7 : f32
      %29 = vector.broadcast %cst_17 : f32 to vector<16x1xf32>
      %30 = arith.addf %25, %29 : vector<16x1xf32>
      %31 = vector.broadcast %30 : vector<16x1xf32> to vector<16x32xf32>
      %32 = arith.divf %28, %31 : vector<16x32xf32>
      %c0_18 = arith.constant 0 : index
      %c0_19 = arith.constant 0 : index
      %33 = vector.load %arg4[%c0_18, %c0_19] : memref<1x32xf32, #tpu.memory_space<vmem>>, vector<1x32xf32>
      %34 = vector.broadcast %33 : vector<1x32xf32> to vector<16x32xf32>
      %35 = arith.addf %32, %34 : vector<16x32xf32>
      %36 = arith.truncf %35 : vector<16x32xf32> to vector<16x32xbf16>
      %c0_20 = arith.constant 0 : index
      %c0_21 = arith.constant 0 : index
      %37 = vector.load %arg8[%c0_20, %c0_21] : memref<16x32xbf16, #tpu.memory_space<vmem>>, vector<16x32xbf16>
      tpu.vector_store %arg8[%c0_20, %c0_21], %36 {strides = array<i32>} : memref<16x32xbf16, #tpu.memory_space<vmem>>, vector<16x32xbf16>,
    } else {
    }
    %c0 = arith.constant 0 : index
    %c0_1 = arith.constant 0 : index
    %3 = vector.load %arg8[%c0, %c0_1] : memref<16x32xbf16, #tpu.memory_space<vmem>>, vector<16x32xbf16>
    %c0_2 = arith.constant 0 : index
    %c0_3 = arith.constant 0 : index
    %4 = vector.load %arg5[%c0_2, %c0_3] : memref<32x64xbf16, #tpu.memory_space<vmem>>, vector<32x64xbf16>
    %cst = arith.constant dense<0.000000e+00> : vector<16x64xf32>
    %5 = tpu.matmul %3, %4, %cst {dimension_numbers = #tpu.dot_dimension_numbers<[1], [0], [0], [1], [0, 0, 1, 1], [], []>} : vector<16x32xbf16>, vector<32x64xbf16>, vector<16x64xf32> -> vector<16x64xf32>
    %c0_4 = arith.constant 0 : index
    %c0_5 = arith.constant 0 : index
    %6 = vector.load %arg6[%c0_4, %c0_5] : memref<1x64xf32, #tpu.memory_space<vmem>>, vector<1x64xf32>
    %7 = vector.broadcast %6 : vector<1x64xf32> to vector<16x64xf32>
    %8 = arith.addf %5, %7 : vector<16x64xf32>
    %cst_6 = arith.constant 0.000000e+00 : f32
    %9 = vector.broadcast %cst_6 : f32 to vector<16x64xf32>
    %10 = arith.maximumf %8, %9 : vector<16x64xf32>
    %11 = arith.truncf %10 : vector<16x64xf32> to vector<16x64xbf16>
    %c0_7 = arith.constant 0 : index
    %c0_8 = arith.constant 0 : index
    %12 = vector.load %arg7[%c0_7, %c0_8] : memref<16x64xbf16, #tpu.memory_space<vmem>>, vector<16x64xbf16>
    tpu.vector_store %arg7[%c0_7, %c0_8], %11 {strides = array<i32>} : memref<16x64xbf16, #tpu.memory_space<vmem>>, vector<16x64xbf16>,
    return
  }
  func.func @transform_0(%arg0: i32, %arg1: i32) -> (i32, i32) {
    %c0_i32 = arith.constant 0 : i32
    %c0_i32_0 = arith.constant 0 : i32
    return %arg0, %c0_i32 : i32, i32
  }
  func.func @transform_1(%arg0: i32, %arg1: i32) -> (i32, i32) {
    %c0_i32 = arith.constant 0 : i32
    %c0_i32_0 = arith.constant 0 : i32
    %c0_i32_1 = arith.constant 0 : i32
    return %c0_i32, %c0_i32_0 : i32, i32
  }
  func.func @transform_2(%arg0: i32, %arg1: i32) -> (i32, i32) {
    %c0_i32 = arith.constant 0 : i32
    %c0_i32_0 = arith.constant 0 : i32
    %c0_i32_1 = arith.constant 0 : i32
    return %c0_i32, %c0_i32_0 : i32, i32
  }
  func.func @transform_3(%arg0: i32, %arg1: i32) -> (i32, i32) {
    %c0_i32 = arith.constant 0 : i32
    %c0_i32_0 = arith.constant 0 : i32
    return %c0_i32, %arg1 : i32, i32
  }
  func.func @transform_4(%arg0: i32, %arg1: i32) -> (i32, i32) {
    %c0_i32 = arith.constant 0 : i32
    %c0_i32_0 = arith.constant 0 : i32
    return %c0_i32, %arg1 : i32, i32
  }
  func.func @transform_5(%arg0: i32, %arg1: i32) -> (i32, i32) {
    %c0_i32 = arith.constant 0 : i32
    return %arg0, %arg1 : i32, i32
  }
}

module attributes {stable_mosaic.version = 11 : i64} {
  func.func @_attn_kernel(%arg0: i32, %arg1: i32, %arg2: memref<1x8x96xbf16, #tpu.memory_space<vmem>>, %arg3: memref<1x8x96xbf16, #tpu.memory_space<vmem>>, %arg4: memref<1x1x8xf32, #tpu.memory_space<vmem>>, %arg5: memref<1x8x32xbf16, #tpu.memory_space<vmem>>) attributes {dimension_semantics = [#tpu.dimension_semantics<parallel>, #tpu.dimension_semantics<parallel>], iteration_bounds = array<i64: 2, 1>, scalar_prefetch = 0 : i64, scratch_operands = 0 : i64, tpu.core_type = #tpu.core_type<tc>, window_params = [{transform_indices = @transform_0, window_bounds = array<i64: 1, 8, 96>}, {transform_indices = @transform_1, window_bounds = array<i64: 1, 8, 96>}, {transform_indices = @transform_2, window_bounds = array<i64: 1, 1, 8>}, {transform_indices = @transform_3, window_bounds = array<i64: 1, 8, 32>}]} {
    %c0 = arith.constant 0 : index
    %c0_0 = arith.constant 0 : index
    %c0_1 = arith.constant 0 : index
    %0 = vector.load %arg4[%c0, %c0_0, %c0_1] : memref<1x1x8xf32, #tpu.memory_space<vmem>>, vector<1x1x8xf32>
    %1 = vector.shape_cast %0 : vector<1x1x8xf32> to vector<1x8xf32>
    %cst = arith.constant 0.000000e+00 : f32
    %2 = vector.broadcast %cst : f32 to vector<1x8xf32>
    %3 = arith.cmpf oeq, %1, %2 : vector<1x8xf32>
    %cst_2 = arith.constant -1.000000e+09 : f32
    %cst_3 = arith.constant 0.000000e+00 : f32
    %4 = vector.broadcast %cst_2 : f32 to vector<1x8xf32>
    %5 = vector.broadcast %cst_3 : f32 to vector<1x8xf32>
    %6 = arith.select %3, %4, %5 : vector<1x8xi1>, vector<1x8xf32>
    %7 = vector.shape_cast %6 : vector<1x8xf32> to vector<1x8xf32>
    %8 = vector.broadcast %7 : vector<1x8xf32> to vector<8x8xf32>
    %c0_4 = arith.constant 0 : index
    %c0_5 = arith.constant 0 : index
    %c0_6 = arith.constant 0 : index
    %9 = vector.load %arg2[%c0_4, %c0_5, %c0_6] : memref<1x8x96xbf16, #tpu.memory_space<vmem>>, vector<1x8x8xbf16>
    %10 = vector.shape_cast %9 : vector<1x8x8xbf16> to vector<8x8xbf16>
    %c0_7 = arith.constant 0 : index
    %c0_8 = arith.constant 0 : index
    %c32 = arith.constant 32 : index
    %11 = vector.load %arg3[%c0_7, %c0_8, %c32] : memref<1x8x96xbf16, #tpu.memory_space<vmem>>, vector<1x8x8xbf16>
    %12 = vector.shape_cast %11 : vector<1x8x8xbf16> to vector<8x8xbf16>
    %c0_9 = arith.constant 0 : index
    %c0_10 = arith.constant 0 : index
    %c64 = arith.constant 64 : index
    %13 = vector.load %arg3[%c0_9, %c0_10, %c64] : memref<1x8x96xbf16, #tpu.memory_space<vmem>>, vector<1x8x8xbf16>
    %14 = vector.shape_cast %13 : vector<1x8x8xbf16> to vector<8x8xbf16>
    %cst_11 = arith.constant dense<0.000000e+00> : vector<8x8xf32>
    %15 = tpu.matmul %10, %12, %cst_11 {dimension_numbers = #tpu.dot_dimension_numbers<[1], [1], [0], [0], [0, 0, 1, 0], [], []>} : vector<8x8xbf16>, vector<8x8xbf16>, vector<8x8xf32> -> vector<8x8xf32>
    %cst_12 = arith.constant 0.353553385 : f32
    %16 = vector.broadcast %cst_12 : f32 to vector<8x8xf32>
    %17 = arith.mulf %15, %16 : vector<8x8xf32>
    %18 = arith.addf %17, %8 : vector<8x8xf32>
    %cst_13 = arith.constant dense<0xFF800000> : vector<8xf32>
    %19 = vector.multi_reduction <maximumf>, %18, %cst_13 [1] : vector<8x8xf32> to vector<8xf32>
    %20 = vector.shape_cast %19 : vector<8xf32> to vector<8x1xf32>
    %21 = vector.broadcast %20 : vector<8x1xf32> to vector<8x8xf32>
    %22 = arith.subf %18, %21 : vector<8x8xf32>
    %23 = math.exp %22 : vector<8x8xf32>
    %cst_14 = arith.constant dense<0.000000e+00> : vector<8xf32>
    %24 = vector.multi_reduction <add>, %23, %cst_14 [1] : vector<8x8xf32> to vector<8xf32>
    %25 = vector.shape_cast %24 : vector<8xf32> to vector<8x1xf32>
    %26 = tpu.reciprocal %25 {approx = true} : vector<8x1xf32> -> vector<8x1xf32>
    %27 = vector.broadcast %26 : vector<8x1xf32> to vector<8x8xf32>
    %28 = arith.mulf %23, %27 : vector<8x8xf32>
    %29 = arith.truncf %28 : vector<8x8xf32> to vector<8x8xbf16>
    %cst_15 = arith.constant dense<0.000000e+00> : vector<8x8xf32>
    %30 = tpu.matmul %29, %14, %cst_15 {dimension_numbers = #tpu.dot_dimension_numbers<[1], [0], [0], [1], [0, 0, 1, 1], [], []>} : vector<8x8xbf16>, vector<8x8xbf16>, vector<8x8xf32> -> vector<8x8xf32>
    %31 = arith.truncf %30 : vector<8x8xf32> to vector<8x8xbf16>
    %c0_16 = arith.constant 0 : index
    %c0_17 = arith.constant 0 : index
    %c0_18 = arith.constant 0 : index
    %32 = vector.load %arg5[%c0_16, %c0_17, %c0_18] : memref<1x8x32xbf16, #tpu.memory_space<vmem>>, vector<1x8x8xbf16>
    %33 = vector.shape_cast %32 : vector<1x8x8xbf16> to vector<8x8xbf16>
    %34 = vector.shape_cast %31 : vector<8x8xbf16> to vector<1x8x8xbf16>
    tpu.vector_store %arg5[%c0_16, %c0_17, %c0_18], %34 {strides = array<i32>} : memref<1x8x32xbf16, #tpu.memory_space<vmem>>, vector<1x8x8xbf16>,
    %c0_19 = arith.constant 0 : index
    %c0_20 = arith.constant 0 : index
    %c8 = arith.constant 8 : index
    %35 = vector.load %arg2[%c0_19, %c0_20, %c8] : memref<1x8x96xbf16, #tpu.memory_space<vmem>>, vector<1x8x8xbf16>
    %36 = vector.shape_cast %35 : vector<1x8x8xbf16> to vector<8x8xbf16>
    %c0_21 = arith.constant 0 : index
    %c0_22 = arith.constant 0 : index
    %c40 = arith.constant 40 : index
    %37 = vector.load %arg3[%c0_21, %c0_22, %c40] : memref<1x8x96xbf16, #tpu.memory_space<vmem>>, vector<1x8x8xbf16>
    %38 = vector.shape_cast %37 : vector<1x8x8xbf16> to vector<8x8xbf16>
    %c0_23 = arith.constant 0 : index
    %c0_24 = arith.constant 0 : index
    %c72 = arith.constant 72 : index
    %39 = vector.load %arg3[%c0_23, %c0_24, %c72] : memref<1x8x96xbf16, #tpu.memory_space<vmem>>, vector<1x8x8xbf16>
    %40 = vector.shape_cast %39 : vector<1x8x8xbf16> to vector<8x8xbf16>
    %cst_25 = arith.constant dense<0.000000e+00> : vector<8x8xf32>
    %41 = tpu.matmul %36, %38, %cst_25 {dimension_numbers = #tpu.dot_dimension_numbers<[1], [1], [0], [0], [0, 0, 1, 0], [], []>} : vector<8x8xbf16>, vector<8x8xbf16>, vector<8x8xf32> -> vector<8x8xf32>
    %cst_26 = arith.constant 0.353553385 : f32
    %42 = vector.broadcast %cst_26 : f32 to vector<8x8xf32>
    %43 = arith.mulf %41, %42 : vector<8x8xf32>
    %44 = arith.addf %43, %8 : vector<8x8xf32>
    %cst_27 = arith.constant dense<0xFF800000> : vector<8xf32>
    %45 = vector.multi_reduction <maximumf>, %44, %cst_27 [1] : vector<8x8xf32> to vector<8xf32>
    %46 = vector.shape_cast %45 : vector<8xf32> to vector<8x1xf32>
    %47 = vector.broadcast %46 : vector<8x1xf32> to vector<8x8xf32>
    %48 = arith.subf %44, %47 : vector<8x8xf32>
    %49 = math.exp %48 : vector<8x8xf32>
    %cst_28 = arith.constant dense<0.000000e+00> : vector<8xf32>
    %50 = vector.multi_reduction <add>, %49, %cst_28 [1] : vector<8x8xf32> to vector<8xf32>
    %51 = vector.shape_cast %50 : vector<8xf32> to vector<8x1xf32>
    %52 = tpu.reciprocal %51 {approx = true} : vector<8x1xf32> -> vector<8x1xf32>
    %53 = vector.broadcast %52 : vector<8x1xf32> to vector<8x8xf32>
    %54 = arith.mulf %49, %53 : vector<8x8xf32>
    %55 = arith.truncf %54 : vector<8x8xf32> to vector<8x8xbf16>
    %cst_29 = arith.constant dense<0.000000e+00> : vector<8x8xf32>
    %56 = tpu.matmul %55, %40, %cst_29 {dimension_numbers = #tpu.dot_dimension_numbers<[1], [0], [0], [1], [0, 0, 1, 1], [], []>} : vector<8x8xbf16>, vector<8x8xbf16>, vector<8x8xf32> -> vector<8x8xf32>
    %57 = arith.truncf %56 : vector<8x8xf32> to vector<8x8xbf16>
    %c0_30 = arith.constant 0 : index
    %c0_31 = arith.constant 0 : index
    %c8_32 = arith.constant 8 : index
    %58 = vector.load %arg5[%c0_30, %c0_31, %c8_32] : memref<1x8x32xbf16, #tpu.memory_space<vmem>>, vector<1x8x8xbf16>
    %59 = vector.shape_cast %58 : vector<1x8x8xbf16> to vector<8x8xbf16>
    %60 = vector.shape_cast %57 : vector<8x8xbf16> to vector<1x8x8xbf16>
    tpu.vector_store %arg5[%c0_30, %c0_31, %c8_32], %60 {strides = array<i32>} : memref<1x8x32xbf16, #tpu.memory_space<vmem>>, vector<1x8x8xbf16>,
    %c0_33 = arith.constant 0 : index
    %c0_34 = arith.constant 0 : index
    %c16 = arith.constant 16 : index
    %61 = vector.load %arg2[%c0_33, %c0_34, %c16] : memref<1x8x96xbf16, #tpu.memory_space<vmem>>, vector<1x8x8xbf16>
    %62 = vector.shape_cast %61 : vector<1x8x8xbf16> to vector<8x8xbf16>
    %c0_35 = arith.constant 0 : index
    %c0_36 = arith.constant 0 : index
    %c48 = arith.constant 48 : index
    %63 = vector.load %arg3[%c0_35, %c0_36, %c48] : memref<1x8x96xbf16, #tpu.memory_space<vmem>>, vector<1x8x8xbf16>
    %64 = vector.shape_cast %63 : vector<1x8x8xbf16> to vector<8x8xbf16>
    %c0_37 = arith.constant 0 : index
    %c0_38 = arith.constant 0 : index
    %c80 = arith.constant 80 : index
    %65 = vector.load %arg3[%c0_37, %c0_38, %c80] : memref<1x8x96xbf16, #tpu.memory_space<vmem>>, vector<1x8x8xbf16>
    %66 = vector.shape_cast %65 : vector<1x8x8xbf16> to vector<8x8xbf16>
    %cst_39 = arith.constant dense<0.000000e+00> : vector<8x8xf32>
    %67 = tpu.matmul %62, %64, %cst_39 {dimension_numbers = #tpu.dot_dimension_numbers<[1], [1], [0], [0], [0, 0, 1, 0], [], []>} : vector<8x8xbf16>, vector<8x8xbf16>, vector<8x8xf32> -> vector<8x8xf32>
    %cst_40 = arith.constant 0.353553385 : f32
    %68 = vector.broadcast %cst_40 : f32 to vector<8x8xf32>
    %69 = arith.mulf %67, %68 : vector<8x8xf32>
    %70 = arith.addf %69, %8 : vector<8x8xf32>
    %cst_41 = arith.constant dense<0xFF800000> : vector<8xf32>
    %71 = vector.multi_reduction <maximumf>, %70, %cst_41 [1] : vector<8x8xf32> to vector<8xf32>
    %72 = vector.shape_cast %71 : vector<8xf32> to vector<8x1xf32>
    %73 = vector.broadcast %72 : vector<8x1xf32> to vector<8x8xf32>
    %74 = arith.subf %70, %73 : vector<8x8xf32>
    %75 = math.exp %74 : vector<8x8xf32>
    %cst_42 = arith.constant dense<0.000000e+00> : vector<8xf32>
    %76 = vector.multi_reduction <add>, %75, %cst_42 [1] : vector<8x8xf32> to vector<8xf32>
    %77 = vector.shape_cast %76 : vector<8xf32> to vector<8x1xf32>
    %78 = tpu.reciprocal %77 {approx = true} : vector<8x1xf32> -> vector<8x1xf32>
    %79 = vector.broadcast %78 : vector<8x1xf32> to vector<8x8xf32>
    %80 = arith.mulf %75, %79 : vector<8x8xf32>
    %81 = arith.truncf %80 : vector<8x8xf32> to vector<8x8xbf16>
    %cst_43 = arith.constant dense<0.000000e+00> : vector<8x8xf32>
    %82 = tpu.matmul %81, %66, %cst_43 {dimension_numbers = #tpu.dot_dimension_numbers<[1], [0], [0], [1], [0, 0, 1, 1], [], []>} : vector<8x8xbf16>, vector<8x8xbf16>, vector<8x8xf32> -> vector<8x8xf32>
    %83 = arith.truncf %82 : vector<8x8xf32> to vector<8x8xbf16>
    %c0_44 = arith.constant 0 : index
    %c0_45 = arith.constant 0 : index
    %c16_46 = arith.constant 16 : index
    %84 = vector.load %arg5[%c0_44, %c0_45, %c16_46] : memref<1x8x32xbf16, #tpu.memory_space<vmem>>, vector<1x8x8xbf16>
    %85 = vector.shape_cast %84 : vector<1x8x8xbf16> to vector<8x8xbf16>
    %86 = vector.shape_cast %83 : vector<8x8xbf16> to vector<1x8x8xbf16>
    tpu.vector_store %arg5[%c0_44, %c0_45, %c16_46], %86 {strides = array<i32>} : memref<1x8x32xbf16, #tpu.memory_space<vmem>>, vector<1x8x8xbf16>,
    %c0_47 = arith.constant 0 : index
    %c0_48 = arith.constant 0 : index
    %c24 = arith.constant 24 : index
    %87 = vector.load %arg2[%c0_47, %c0_48, %c24] : memref<1x8x96xbf16, #tpu.memory_space<vmem>>, vector<1x8x8xbf16>
    %88 = vector.shape_cast %87 : vector<1x8x8xbf16> to vector<8x8xbf16>
    %c0_49 = arith.constant 0 : index
    %c0_50 = arith.constant 0 : index
    %c56 = arith.constant 56 : index
    %89 = vector.load %arg3[%c0_49, %c0_50, %c56] : memref<1x8x96xbf16, #tpu.memory_space<vmem>>, vector<1x8x8xbf16>
    %90 = vector.shape_cast %89 : vector<1x8x8xbf16> to vector<8x8xbf16>
    %c0_51 = arith.constant 0 : index
    %c0_52 = arith.constant 0 : index
    %c88 = arith.constant 88 : index
    %91 = vector.load %arg3[%c0_51, %c0_52, %c88] : memref<1x8x96xbf16, #tpu.memory_space<vmem>>, vector<1x8x8xbf16>
    %92 = vector.shape_cast %91 : vector<1x8x8xbf16> to vector<8x8xbf16>
    %cst_53 = arith.constant dense<0.000000e+00> : vector<8x8xf32>
    %93 = tpu.matmul %88, %90, %cst_53 {dimension_numbers = #tpu.dot_dimension_numbers<[1], [1], [0], [0], [0, 0, 1, 0], [], []>} : vector<8x8xbf16>, vector<8x8xbf16>, vector<8x8xf32> -> vector<8x8xf32>
    %cst_54 = arith.constant 0.353553385 : f32
    %94 = vector.broadcast %cst_54 : f32 to vector<8x8xf32>
    %95 = arith.mulf %93, %94 : vector<8x8xf32>
    %96 = arith.addf %95, %8 : vector<8x8xf32>
    %cst_55 = arith.constant dense<0xFF800000> : vector<8xf32>
    %97 = vector.multi_reduction <maximumf>, %96, %cst_55 [1] : vector<8x8xf32> to vector<8xf32>
    %98 = vector.shape_cast %97 : vector<8xf32> to vector<8x1xf32>
    %99 = vector.broadcast %98 : vector<8x1xf32> to vector<8x8xf32>
    %100 = arith.subf %96, %99 : vector<8x8xf32>
    %101 = math.exp %100 : vector<8x8xf32>
    %cst_56 = arith.constant dense<0.000000e+00> : vector<8xf32>
    %102 = vector.multi_reduction <add>, %101, %cst_56 [1] : vector<8x8xf32> to vector<8xf32>
    %103 = vector.shape_cast %102 : vector<8xf32> to vector<8x1xf32>
    %104 = tpu.reciprocal %103 {approx = true} : vector<8x1xf32> -> vector<8x1xf32>
    %105 = vector.broadcast %104 : vector<8x1xf32> to vector<8x8xf32>
    %106 = arith.mulf %101, %105 : vector<8x8xf32>
    %107 = arith.truncf %106 : vector<8x8xf32> to vector<8x8xbf16>
    %cst_57 = arith.constant dense<0.000000e+00> : vector<8x8xf32>
    %108 = tpu.matmul %107, %92, %cst_57 {dimension_numbers = #tpu.dot_dimension_numbers<[1], [0], [0], [1], [0, 0, 1, 1], [], []>} : vector<8x8xbf16>, vector<8x8xbf16>, vector<8x8xf32> -> vector<8x8xf32>
    %109 = arith.truncf %108 : vector<8x8xf32> to vector<8x8xbf16>
    %c0_58 = arith.constant 0 : index
    %c0_59 = arith.constant 0 : index
    %c24_60 = arith.constant 24 : index
    %110 = vector.load %arg5[%c0_58, %c0_59, %c24_60] : memref<1x8x32xbf16, #tpu.memory_space<vmem>>, vector<1x8x8xbf16>
    %111 = vector.shape_cast %110 : vector<1x8x8xbf16> to vector<8x8xbf16>
    %112 = vector.shape_cast %109 : vector<8x8xbf16> to vector<1x8x8xbf16>
    tpu.vector_store %arg5[%c0_58, %c0_59, %c24_60], %112 {strides = array<i32>} : memref<1x8x32xbf16, #tpu.memory_space<vmem>>, vector<1x8x8xbf16>,
    return
  }
  func.func @transform_0(%arg0: i32, %arg1: i32) -> (i32, i32, i32) {
    %c0_i32 = arith.constant 0 : i32
    %c0_i32_0 = arith.constant 0 : i32
    return %arg0, %arg1, %c0_i32 : i32, i32, i32
  }
  func.func @transform_1(%arg0: i32, %arg1: i32) -> (i32, i32, i32) {
    %c0_i32 = arith.constant 0 : i32
    %c0_i32_0 = arith.constant 0 : i32
    %c0_i32_1 = arith.constant 0 : i32
    return %arg0, %c0_i32, %c0_i32_0 : i32, i32, i32
  }
  func.func @transform_2(%arg0: i32, %arg1: i32) -> (i32, i32, i32) {
    %c0_i32 = arith.constant 0 : i32
    %c0_i32_0 = arith.constant 0 : i32
    %c0_i32_1 = arith.constant 0 : i32
    return %arg0, %c0_i32, %c0_i32_0 : i32, i32, i32
  }
  func.func @transform_3(%arg0: i32, %arg1: i32) -> (i32, i32, i32) {
    %c0_i32 = arith.constant 0 : i32
    %c0_i32_0 = arith.constant 0 : i32
    return %arg0, %arg1, %c0_i32 : i32, i32, i32
  }
}

module attributes {stable_mosaic.version = 11 : i64} {
  func.func @_ln_matmul_kernel(%arg0: i32, %arg1: i32, %arg2: memref<16x32xf32, #tpu.memory_space<vmem>>, %arg3: memref<1x32xf32, #tpu.memory_space<vmem>>, %arg4: memref<1x32xf32, #tpu.memory_space<vmem>>, %arg5: memref<32x96xbf16, #tpu.memory_space<vmem>>, %arg6: memref<1x96xf32, #tpu.memory_space<vmem>>, %arg7: memref<16x96xbf16, #tpu.memory_space<vmem>>, %arg8: memref<16x32xbf16, #tpu.memory_space<vmem>>) attributes {dimension_semantics = [#tpu.dimension_semantics<parallel>, #tpu.dimension_semantics<arbitrary>], iteration_bounds = array<i64: 1, 1>, scalar_prefetch = 0 : i64, scratch_operands = 1 : i64, tpu.core_type = #tpu.core_type<tc>, window_params = [{transform_indices = @transform_0, window_bounds = array<i64: 16, 32>}, {pipeline_mode = #tpu.pipeline_mode<synchronous>, transform_indices = @transform_1, window_bounds = array<i64: 1, 32>}, {pipeline_mode = #tpu.pipeline_mode<synchronous>, transform_indices = @transform_2, window_bounds = array<i64: 1, 32>}, {transform_indices = @transform_3, window_bounds = array<i64: 32, 96>}, {transform_indices = @transform_4, window_bounds = array<i64: 1, 96>}, {transform_indices = @transform_5, window_bounds = array<i64: 16, 96>}]} {
    %c0_i32 = arith.constant 0 : i32
    %0 = arith.cmpi eq, %arg1, %c0_i32 : i32
    %1 = arith.extui %0 : i1 to i32
    %c0_i32_0 = arith.constant 0 : i32
    %2 = arith.cmpi ne, %1, %c0_i32_0 : i32
    scf.if %2 {
      %c0_8 = arith.constant 0 : index
      %c0_9 = arith.constant 0 : index
      %11 = vector.load %arg2[%c0_8, %c0_9] : memref<16x32xf32, #tpu.memory_space<vmem>>, vector<16x32xf32>
      %cst_10 = arith.constant dense<0.000000e+00> : vector<16xf32>
      %12 = vector.multi_reduction <add>, %11, %cst_10 [1] : vector<16x32xf32> to vector<16xf32>
      %13 = vector.shape_cast %12 : vector<16xf32> to vector<16x1xf32>
      %cst_11 = arith.constant 3.200000e+01 : f32
      %14 = vector.broadcast %cst_11 : f32 to vector<16x1xf32>
      %15 = arith.divf %13, %14 : vector<16x1xf32>
      %16 = vector.broadcast %15 : vector<16x1xf32> to vector<16x32xf32>
      %17 = arith.subf %11, %16 : vector<16x32xf32>
      %18 = arith.mulf %17, %17 : vector<16x32xf32>
      %cst_12 = arith.constant dense<0.000000e+00> : vector<16xf32>
      %19 = vector.multi_reduction <add>, %18, %cst_12 [1] : vector<16x32xf32> to vector<16xf32>
      %20 = vector.shape_cast %19 : vector<16xf32> to vector<16x1xf32>
      %cst_13 = arith.constant 0.0322580636 : f32
      %21 = vector.broadcast %cst_13 : f32 to vector<16x1xf32>
      %22 = arith.mulf %20, %21 : vector<16x1xf32>
      %23 = math.sqrt %22 : vector<16x1xf32>
      %c0_14 = arith.constant 0 : index
      %c0_15 = arith.constant 0 : index
      %24 = vector.load %arg3[%c0_14, %c0_15] : memref<1x32xf32, #tpu.memory_space<vmem>>, vector<1x32xf32>
      %25 = vector.broadcast %24 : vector<1x32xf32> to vector<16x32xf32>
      %26 = arith.mulf %25, %17 : vector<16x32xf32>
      %cst_16 = arith.constant 9.99999997E-7 : f32
      %27 = vector.broadcast %cst_16 : f32 to vector<16x1xf32>
      %28 = arith.addf %23, %27 : vector<16x1xf32>
      %29 = vector.broadcast %28 : vector<16x1xf32> to vector<16x32xf32>
      %30 = arith.divf %26, %29 : vector<16x32xf32>
      %c0_17 = arith.constant 0 : index
      %c0_18 = arith.constant 0 : index
      %31 = vector.load %arg4[%c0_17, %c0_18] : memref<1x32xf32, #tpu.memory_space<vmem>>, vector<1x32xf32>
      %32 = vector.broadcast %31 : vector<1x32xf32> to vector<16x32xf32>
      %33 = arith.addf %30, %32 : vector<16x32xf32>
      %34 = arith.truncf %33 : vector<16x32xf32> to vector<16x32xbf16>
      %c0_19 = arith.constant 0 : index
      %c0_20 = arith.constant 0 : index
      %35 = vector.load %arg8[%c0_19, %c0_20] : memref<16x32xbf16, #tpu.memory_space<vmem>>, vector<16x32xbf16>
      tpu.vector_store %arg8[%c0_19, %c0_20], %34 {strides = array<i32>} : memref<16x32xbf16, #tpu.memory_space<vmem>>, vector<16x32xbf16>,
    } else {
    }
    %c0 = arith.constant 0 : index
    %c0_1 = arith.constant 0 : index
    %3 = vector.load %arg8[%c0, %c0_1] : memref<16x32xbf16, #tpu.memory_space<vmem>>, vector<16x32xbf16>
    %c0_2 = arith.constant 0 : index
    %c0_3 = arith.constant 0 : index
    %4 = vector.load %arg5[%c0_2, %c0_3] : memref<32x96xbf16, #tpu.memory_space<vmem>>, vector<32x96xbf16>
    %cst = arith.constant dense<0.000000e+00> : vector<16x96xf32>
    %5 = tpu.matmul %3, %4, %cst {dimension_numbers = #tpu.dot_dimension_numbers<[1], [0], [0], [1], [0, 0, 1, 1], [], []>} : vector<16x32xbf16>, vector<32x96xbf16>, vector<16x96xf32> -> vector<16x96xf32>
    %c0_4 = arith.constant 0 : index
    %c0_5 = arith.constant 0 : index
    %6 = vector.load %arg6[%c0_4, %c0_5] : memref<1x96xf32, #tpu.memory_space<vmem>>, vector<1x96xf32>
    %7 = vector.broadcast %6 : vector<1x96xf32> to vector<16x96xf32>
    %8 = arith.addf %5, %7 : vector<16x96xf32>
    %9 = arith.truncf %8 : vector<16x96xf32> to vector<16x96xbf16>
    %c0_6 = arith.constant 0 : index
    %c0_7 = arith.constant 0 : index
    %10 = vector.load %arg7[%c0_6, %c0_7] : memref<16x96xbf16, #tpu.memory_space<vmem>>, vector<16x96xbf16>
    tpu.vector_store %arg7[%c0_6, %c0_7], %9 {strides = array<i32>} : memref<16x96xbf16, #tpu.memory_space<vmem>>, vector<16x96xbf16>,
    return
  }
  func.func @transform_0(%arg0: i32, %arg1: i32) -> (i32, i32) {
    %c0_i32 = arith.constant 0 : i32
    %c0_i32_0 = arith.constant 0 : i32
    return %arg0, %c0_i32 : i32, i32
  }
  func.func @transform_1(%arg0: i32, %arg1: i32) -> (i32, i32) {
    %c0_i32 = arith.constant 0 : i32
    %c0_i32_0 = arith.constant 0 : i32
    %c0_i32_1 = arith.constant 0 : i32
    return %c0_i32, %c0_i32_0 : i32, i32
  }
  func.func @transform_2(%arg0: i32, %arg1: i32) -> (i32, i32) {
    %c0_i32 = arith.constant 0 : i32
    %c0_i32_0 = arith.constant 0 : i32
    %c0_i32_1 = arith.constant 0 : i32
    return %c0_i32, %c0_i32_0 : i32, i32
  }
  func.func @transform_3(%arg0: i32, %arg1: i32) -> (i32, i32) {
    %c0_i32 = arith.constant 0 : i32
    %c0_i32_0 = arith.constant 0 : i32
    return %c0_i32, %arg1 : i32, i32
  }
  func.func @transform_4(%arg0: i32, %arg1: i32) -> (i32, i32) {
    %c0_i32 = arith.constant 0 : i32
    %c0_i32_0 = arith.constant 0 : i32
    return %c0_i32, %arg1 : i32, i32
  }
  func.func @transform_5(%arg0: i32, %arg1: i32) -> (i32, i32) {
    %c0_i32 = arith.constant 0 : i32
    return %arg0, %arg1 : i32, i32
  }
}

module attributes {stable_mosaic.version = 11 : i64} {
  func.func @_matmul_res_kernel(%arg0: i32, %arg1: i32, %arg2: i32, %arg3: memref<16x32xbf16, #tpu.memory_space<vmem>>, %arg4: memref<32x32xbf16, #tpu.memory_space<vmem>>, %arg5: memref<1x32xf32, #tpu.memory_space<vmem>>, %arg6: memref<16x32xf32, #tpu.memory_space<vmem>>, %arg7: memref<16x32xf32, #tpu.memory_space<vmem>>, %arg8: memref<16x32xf32, #tpu.memory_space<vmem>>) attributes {dimension_semantics = [#tpu.dimension_semantics<parallel>, #tpu.dimension_semantics<parallel>, #tpu.dimension_semantics<arbitrary>], iteration_bounds = array<i64: 1, 1, 1>, scalar_prefetch = 0 : i64, scratch_operands = 1 : i64, tpu.core_type = #tpu.core_type<tc>, window_params = [{transform_indices = @transform_0, window_bounds = array<i64: 16, 32>}, {transform_indices = @transform_1, window_bounds = array<i64: 32, 32>}, {transform_indices = @transform_2, window_bounds = array<i64: 1, 32>}, {transform_indices = @transform_3, window_bounds = array<i64: 16, 32>}, {transform_indices = @transform_4, window_bounds = array<i64: 16, 32>}]} {
    %c0_i32 = arith.constant 0 : i32
    %0 = arith.cmpi eq, %arg2, %c0_i32 : i32
    %1 = arith.extui %0 : i1 to i32
    %c0_i32_0 = arith.constant 0 : i32
    %2 = arith.cmpi ne, %1, %c0_i32_0 : i32
    scf.if %2 {
      %cst_10 = arith.constant 0.000000e+00 : f32
      %12 = vector.broadcast %cst_10 : f32 to vector<16x32xf32>
      %c0_11 = arith.constant 0 : index
      %c0_12 = arith.constant 0 : index
      %13 = vector.load %arg8[%c0_11, %c0_12] : memref<16x32xf32, #tpu.memory_space<vmem>>, vector<16x32xf32>
      tpu.vector_store %arg8[%c0_11, %c0_12], %12 {strides = array<i32>} : memref<16x32xf32, #tpu.memory_space<vmem>>, vector<16x32xf32>,
    } else {
    }
    %c0 = arith.constant 0 : index
    %c0_1 = arith.constant 0 : index
    %3 = vector.load %arg8[%c0, %c0_1] : memref<16x32xf32, #tpu.memory_space<vmem>>, vector<16x32xf32>
    %c0_2 = arith.constant 0 : index
    %c0_3 = arith.constant 0 : index
    %4 = vector.load %arg3[%c0_2, %c0_3] : memref<16x32xbf16, #tpu.memory_space<vmem>>, vector<16x32xbf16>
    %c0_4 = arith.constant 0 : index
    %c0_5 = arith.constant 0 : index
    %5 = vector.load %arg4[%c0_4, %c0_5] : memref<32x32xbf16, #tpu.memory_space<vmem>>, vector<32x32xbf16>
    %cst = arith.constant dense<0.000000e+00> : vector<16x32xf32>
    %6 = tpu.matmul %4, %5, %cst {dimension_numbers = #tpu.dot_dimension_numbers<[1], [0], [0], [1], [0, 0, 1, 1], [], []>} : vector<16x32xbf16>, vector<32x32xbf16>, vector<16x32xf32> -> vector<16x32xf32>
    %7 = arith.addf %3, %6 : vector<16x32xf32>
    %c0_6 = arith.constant 0 : index
    %c0_7 = arith.constant 0 : index
    %8 = vector.load %arg8[%c0_6, %c0_7] : memref<16x32xf32, #tpu.memory_space<vmem>>, vector<16x32xf32>
    tpu.vector_store %arg8[%c0_6, %c0_7], %7 {strides = array<i32>} : memref<16x32xf32, #tpu.memory_space<vmem>>, vector<16x32xf32>,
    %c0_i32_8 = arith.constant 0 : i32
    %9 = arith.cmpi eq, %arg2, %c0_i32_8 : i32
    %10 = arith.extui %9 : i1 to i32
    %c0_i32_9 = arith.constant 0 : i32
    %11 = arith.cmpi ne, %10, %c0_i32_9 : i32
    scf.if %11 {
      %c0_10 = arith.constant 0 : index
      %c0_11 = arith.constant 0 : index
      %12 = vector.load %arg8[%c0_10, %c0_11] : memref<16x32xf32, #tpu.memory_space<vmem>>, vector<16x32xf32>
      %c0_12 = arith.constant 0 : index
      %c0_13 = arith.constant 0 : index
      %13 = vector.load %arg5[%c0_12, %c0_13] : memref<1x32xf32, #tpu.memory_space<vmem>>, vector<1x32xf32>
      %14 = vector.broadcast %13 : vector<1x32xf32> to vector<16x32xf32>
      %15 = arith.addf %12, %14 : vector<16x32xf32>
      %c0_14 = arith.constant 0 : index
      %c0_15 = arith.constant 0 : index
      %16 = vector.load %arg6[%c0_14, %c0_15] : memref<16x32xf32, #tpu.memory_space<vmem>>, vector<16x32xf32>
      %17 = arith.addf %15, %16 : vector<16x32xf32>
      %c0_16 = arith.constant 0 : index
      %c0_17 = arith.constant 0 : index
      %18 = vector.load %arg7[%c0_16, %c0_17] : memref<16x32xf32, #tpu.memory_space<vmem>>, vector<16x32xf32>
      tpu.vector_store %arg7[%c0_16, %c0_17], %17 {strides = array<i32>} : memref<16x32xf32, #tpu.memory_space<vmem>>, vector<16x32xf32>,
    } else {
    }
    return
  }
  func.func @transform_0(%arg0: i32, %arg1: i32, %arg2: i32) -> (i32, i32) {
    %c0_i32 = arith.constant 0 : i32
    return %arg0, %arg2 : i32, i32
  }
  func.func @transform_1(%arg0: i32, %arg1: i32, %arg2: i32) -> (i32, i32) {
    %c0_i32 = arith.constant 0 : i32
    return %arg2, %arg1 : i32, i32
  }
  func.func @transform_2(%arg0: i32, %arg1: i32, %arg2: i32) -> (i32, i32) {
    %c0_i32 = arith.constant 0 : i32
    %c0_i32_0 = arith.constant 0 : i32
    return %c0_i32, %arg1 : i32, i32
  }
  func.func @transform_3(%arg0: i32, %arg1: i32, %arg2: i32) -> (i32, i32) {
    %c0_i32 = arith.constant 0 : i32
    return %arg0, %arg1 : i32, i32
  }
  func.func @transform_4(%arg0: i32, %arg1: i32, %arg2: i32) -> (i32, i32) {
    %c0_i32 = arith.constant 0 : i32
    return %arg0, %arg1 : i32, i32
  }
}

module attributes {stable_mosaic.version = 11 : i64} {
  func.func @_matmul_res_kernel(%arg0: i32, %arg1: i32, %arg2: i32, %arg3: memref<16x64xbf16, #tpu.memory_space<vmem>>, %arg4: memref<64x32xbf16, #tpu.memory_space<vmem>>, %arg5: memref<1x32xf32, #tpu.memory_space<vmem>>, %arg6: memref<16x32xf32, #tpu.memory_space<vmem>>, %arg7: memref<16x32xf32, #tpu.memory_space<vmem>>, %arg8: memref<16x32xf32, #tpu.memory_space<vmem>>) attributes {dimension_semantics = [#tpu.dimension_semantics<parallel>, #tpu.dimension_semantics<parallel>, #tpu.dimension_semantics<arbitrary>], iteration_bounds = array<i64: 1, 1, 1>, scalar_prefetch = 0 : i64, scratch_operands = 1 : i64, tpu.core_type = #tpu.core_type<tc>, window_params = [{transform_indices = @transform_0, window_bounds = array<i64: 16, 64>}, {transform_indices = @transform_1, window_bounds = array<i64: 64, 32>}, {transform_indices = @transform_2, window_bounds = array<i64: 1, 32>}, {transform_indices = @transform_3, window_bounds = array<i64: 16, 32>}, {transform_indices = @transform_4, window_bounds = array<i64: 16, 32>}]} {
    %c0_i32 = arith.constant 0 : i32
    %0 = arith.cmpi eq, %arg2, %c0_i32 : i32
    %1 = arith.extui %0 : i1 to i32
    %c0_i32_0 = arith.constant 0 : i32
    %2 = arith.cmpi ne, %1, %c0_i32_0 : i32
    scf.if %2 {
      %cst_10 = arith.constant 0.000000e+00 : f32
      %12 = vector.broadcast %cst_10 : f32 to vector<16x32xf32>
      %c0_11 = arith.constant 0 : index
      %c0_12 = arith.constant 0 : index
      %13 = vector.load %arg8[%c0_11, %c0_12] : memref<16x32xf32, #tpu.memory_space<vmem>>, vector<16x32xf32>
      tpu.vector_store %arg8[%c0_11, %c0_12], %12 {strides = array<i32>} : memref<16x32xf32, #tpu.memory_space<vmem>>, vector<16x32xf32>,
    } else {
    }
    %c0 = arith.constant 0 : index
    %c0_1 = arith.constant 0 : index
    %3 = vector.load %arg8[%c0, %c0_1] : memref<16x32xf32, #tpu.memory_space<vmem>>, vector<16x32xf32>
    %c0_2 = arith.constant 0 : index
    %c0_3 = arith.constant 0 : index
    %4 = vector.load %arg3[%c0_2, %c0_3] : memref<16x64xbf16, #tpu.memory_space<vmem>>, vector<16x64xbf16>
    %c0_4 = arith.constant 0 : index
    %c0_5 = arith.constant 0 : index
    %5 = vector.load %arg4[%c0_4, %c0_5] : memref<64x32xbf16, #tpu.memory_space<vmem>>, vector<64x32xbf16>
    %cst = arith.constant dense<0.000000e+00> : vector<16x32xf32>
    %6 = tpu.matmul %4, %5, %cst {dimension_numbers = #tpu.dot_dimension_numbers<[1], [0], [0], [1], [0, 0, 1, 1], [], []>} : vector<16x64xbf16>, vector<64x32xbf16>, vector<16x32xf32> -> vector<16x32xf32>
    %7 = arith.addf %3, %6 : vector<16x32xf32>
    %c0_6 = arith.constant 0 : index
    %c0_7 = arith.constant 0 : index
    %8 = vector.load %arg8[%c0_6, %c0_7] : memref<16x32xf32, #tpu.memory_space<vmem>>, vector<16x32xf32>
    tpu.vector_store %arg8[%c0_6, %c0_7], %7 {strides = array<i32>} : memref<16x32xf32, #tpu.memory_space<vmem>>, vector<16x32xf32>,
    %c0_i32_8 = arith.constant 0 : i32
    %9 = arith.cmpi eq, %arg2, %c0_i32_8 : i32
    %10 = arith.extui %9 : i1 to i32
    %c0_i32_9 = arith.constant 0 : i32
    %11 = arith.cmpi ne, %10, %c0_i32_9 : i32
    scf.if %11 {
      %c0_10 = arith.constant 0 : index
      %c0_11 = arith.constant 0 : index
      %12 = vector.load %arg8[%c0_10, %c0_11] : memref<16x32xf32, #tpu.memory_space<vmem>>, vector<16x32xf32>
      %c0_12 = arith.constant 0 : index
      %c0_13 = arith.constant 0 : index
      %13 = vector.load %arg5[%c0_12, %c0_13] : memref<1x32xf32, #tpu.memory_space<vmem>>, vector<1x32xf32>
      %14 = vector.broadcast %13 : vector<1x32xf32> to vector<16x32xf32>
      %15 = arith.addf %12, %14 : vector<16x32xf32>
      %c0_14 = arith.constant 0 : index
      %c0_15 = arith.constant 0 : index
      %16 = vector.load %arg6[%c0_14, %c0_15] : memref<16x32xf32, #tpu.memory_space<vmem>>, vector<16x32xf32>
      %17 = arith.addf %15, %16 : vector<16x32xf32>
      %c0_16 = arith.constant 0 : index
      %c0_17 = arith.constant 0 : index
      %18 = vector.load %arg7[%c0_16, %c0_17] : memref<16x32xf32, #tpu.memory_space<vmem>>, vector<16x32xf32>
      tpu.vector_store %arg7[%c0_16, %c0_17], %17 {strides = array<i32>} : memref<16x32xf32, #tpu.memory_space<vmem>>, vector<16x32xf32>,
    } else {
    }
    return
  }
  func.func @transform_0(%arg0: i32, %arg1: i32, %arg2: i32) -> (i32, i32) {
    %c0_i32 = arith.constant 0 : i32
    return %arg0, %arg2 : i32, i32
  }
  func.func @transform_1(%arg0: i32, %arg1: i32, %arg2: i32) -> (i32, i32) {
    %c0_i32 = arith.constant 0 : i32
    return %arg2, %arg1 : i32, i32
  }
  func.func @transform_2(%arg0: i32, %arg1: i32, %arg2: i32) -> (i32, i32) {
    %c0_i32 = arith.constant 0 : i32
    %c0_i32_0 = arith.constant 0 : i32
    return %c0_i32, %arg1 : i32, i32
  }
  func.func @transform_3(%arg0: i32, %arg1: i32, %arg2: i32) -> (i32, i32) {
    %c0_i32 = arith.constant 0 : i32
    return %arg0, %arg1 : i32, i32
  }
  func.func @transform_4(%arg0: i32, %arg1: i32, %arg2: i32) -> (i32, i32) {
    %c0_i32 = arith.constant 0 : i32
    return %arg0, %arg1 : i32, i32
  }
}

module attributes {stable_mosaic.version = 11 : i64} {
  func.func @_matmul_res_ln_kernel(%arg0: i32, %arg1: i32, %arg2: i32, %arg3: memref<16x64xbf16, #tpu.memory_space<vmem>>, %arg4: memref<64x32xbf16, #tpu.memory_space<vmem>>, %arg5: memref<1x32xf32, #tpu.memory_space<vmem>>, %arg6: memref<16x32xf32, #tpu.memory_space<vmem>>, %arg7: memref<1x32xf32, #tpu.memory_space<vmem>>, %arg8: memref<1x32xf32, #tpu.memory_space<vmem>>, %arg9: memref<16x32xf32, #tpu.memory_space<vmem>>, %arg10: memref<16x32xf32, #tpu.memory_space<vmem>>) attributes {dimension_semantics = [#tpu.dimension_semantics<parallel>, #tpu.dimension_semantics<parallel>, #tpu.dimension_semantics<arbitrary>], iteration_bounds = array<i64: 1, 1, 1>, scalar_prefetch = 0 : i64, scratch_operands = 1 : i64, tpu.core_type = #tpu.core_type<tc>, window_params = [{transform_indices = @transform_0, window_bounds = array<i64: 16, 64>}, {transform_indices = @transform_1, window_bounds = array<i64: 64, 32>}, {transform_indices = @transform_2, window_bounds = array<i64: 1, 32>}, {transform_indices = @transform_3, window_bounds = array<i64: 16, 32>}, {transform_indices = @transform_4, window_bounds = array<i64: 1, 32>}, {transform_indices = @transform_5, window_bounds = array<i64: 1, 32>}, {transform_indices = @transform_6, window_bounds = array<i64: 16, 32>}]} {
    %c0_i32 = arith.constant 0 : i32
    %0 = arith.cmpi eq, %arg2, %c0_i32 : i32
    %1 = arith.extui %0 : i1 to i32
    %c0_i32_0 = arith.constant 0 : i32
    %2 = arith.cmpi ne, %1, %c0_i32_0 : i32
    scf.if %2 {
      %cst_10 = arith.constant 0.000000e+00 : f32
      %12 = vector.broadcast %cst_10 : f32 to vector<16x32xf32>
      %c0_11 = arith.constant 0 : index
      %c0_12 = arith.constant 0 : index
      %13 = vector.load %arg10[%c0_11, %c0_12] : memref<16x32xf32, #tpu.memory_space<vmem>>, vector<16x32xf32>
      tpu.vector_store %arg10[%c0_11, %c0_12], %12 {strides = array<i32>} : memref<16x32xf32, #tpu.memory_space<vmem>>, vector<16x32xf32>,
    } else {
    }
    %c0 = arith.constant 0 : index
    %c0_1 = arith.constant 0 : index
    %3 = vector.load %arg10[%c0, %c0_1] : memref<16x32xf32, #tpu.memory_space<vmem>>, vector<16x32xf32>
    %c0_2 = arith.constant 0 : index
    %c0_3 = arith.constant 0 : index
    %4 = vector.load %arg3[%c0_2, %c0_3] : memref<16x64xbf16, #tpu.memory_space<vmem>>, vector<16x64xbf16>
    %c0_4 = arith.constant 0 : index
    %c0_5 = arith.constant 0 : index
    %5 = vector.load %arg4[%c0_4, %c0_5] : memref<64x32xbf16, #tpu.memory_space<vmem>>, vector<64x32xbf16>
    %cst = arith.constant dense<0.000000e+00> : vector<16x32xf32>
    %6 = tpu.matmul %4, %5, %cst {dimension_numbers = #tpu.dot_dimension_numbers<[1], [0], [0], [1], [0, 0, 1, 1], [], []>} : vector<16x64xbf16>, vector<64x32xbf16>, vector<16x32xf32> -> vector<16x32xf32>
    %7 = arith.addf %3, %6 : vector<16x32xf32>
    %c0_6 = arith.constant 0 : index
    %c0_7 = arith.constant 0 : index
    %8 = vector.load %arg10[%c0_6, %c0_7] : memref<16x32xf32, #tpu.memory_space<vmem>>, vector<16x32xf32>
    tpu.vector_store %arg10[%c0_6, %c0_7], %7 {strides = array<i32>} : memref<16x32xf32, #tpu.memory_space<vmem>>, vector<16x32xf32>,
    %c0_i32_8 = arith.constant 0 : i32
    %9 = arith.cmpi eq, %arg2, %c0_i32_8 : i32
    %10 = arith.extui %9 : i1 to i32
    %c0_i32_9 = arith.constant 0 : i32
    %11 = arith.cmpi ne, %10, %c0_i32_9 : i32
    scf.if %11 {
      %c0_10 = arith.constant 0 : index
      %c0_11 = arith.constant 0 : index
      %12 = vector.load %arg10[%c0_10, %c0_11] : memref<16x32xf32, #tpu.memory_space<vmem>>, vector<16x32xf32>
      %c0_12 = arith.constant 0 : index
      %c0_13 = arith.constant 0 : index
      %13 = vector.load %arg5[%c0_12, %c0_13] : memref<1x32xf32, #tpu.memory_space<vmem>>, vector<1x32xf32>
      %14 = vector.broadcast %13 : vector<1x32xf32> to vector<16x32xf32>
      %15 = arith.addf %12, %14 : vector<16x32xf32>
      %c0_14 = arith.constant 0 : index
      %c0_15 = arith.constant 0 : index
      %16 = vector.load %arg6[%c0_14, %c0_15] : memref<16x32xf32, #tpu.memory_space<vmem>>, vector<16x32xf32>
      %17 = arith.addf %15, %16 : vector<16x32xf32>
      %cst_16 = arith.constant dense<0.000000e+00> : vector<16xf32>
      %18 = vector.multi_reduction <add>, %17, %cst_16 [1] : vector<16x32xf32> to vector<16xf32>
      %19 = vector.shape_cast %18 : vector<16xf32> to vector<16x1xf32>
      %cst_17 = arith.constant 3.200000e+01 : f32
      %20 = vector.broadcast %cst_17 : f32 to vector<16x1xf32>
      %21 = arith.divf %19, %20 : vector<16x1xf32>
      %22 = vector.broadcast %21 : vector<16x1xf32> to vector<16x32xf32>
      %23 = arith.subf %17, %22 : vector<16x32xf32>
      %24 = arith.mulf %23, %23 : vector<16x32xf32>
      %cst_18 = arith.constant dense<0.000000e+00> : vector<16xf32>
      %25 = vector.multi_reduction <add>, %24, %cst_18 [1] : vector<16x32xf32> to vector<16xf32>
      %26 = vector.shape_cast %25 : vector<16xf32> to vector<16x1xf32>
      %cst_19 = arith.constant 0.0322580636 : f32
      %27 = vector.broadcast %cst_19 : f32 to vector<16x1xf32>
      %28 = arith.mulf %26, %27 : vector<16x1xf32>
      %29 = math.sqrt %28 : vector<16x1xf32>
      %c0_20 = arith.constant 0 : index
      %c0_21 = arith.constant 0 : index
      %30 = vector.load %arg7[%c0_20, %c0_21] : memref<1x32xf32, #tpu.memory_space<vmem>>, vector<1x32xf32>
      %31 = vector.broadcast %30 : vector<1x32xf32> to vector<16x32xf32>
      %32 = arith.mulf %31, %23 : vector<16x32xf32>
      %cst_22 = arith.constant 9.99999997E-7 : f32
      %33 = vector.broadcast %cst_22 : f32 to vector<16x1xf32>
      %34 = arith.addf %29, %33 : vector<16x1xf32>
      %35 = vector.broadcast %34 : vector<16x1xf32> to vector<16x32xf32>
      %36 = arith.divf %32, %35 : vector<16x32xf32>
      %c0_23 = arith.constant 0 : index
      %c0_24 = arith.constant 0 : index
      %37 = vector.load %arg8[%c0_23, %c0_24] : memref<1x32xf32, #tpu.memory_space<vmem>>, vector<1x32xf32>
      %38 = vector.broadcast %37 : vector<1x32xf32> to vector<16x32xf32>
      %39 = arith.addf %36, %38 : vector<16x32xf32>
      %c0_25 = arith.constant 0 : index
      %c0_26 = arith.constant 0 : index
      %40 = vector.load %arg9[%c0_25, %c0_26] : memref<16x32xf32, #tpu.memory_space<vmem>>, vector<16x32xf32>
      tpu.vector_store %arg9[%c0_25, %c0_26], %39 {strides = array<i32>} : memref<16x32xf32, #tpu.memory_space<vmem>>, vector<16x32xf32>,
    } else {
    }
    return
  }
  func.func @transform_0(%arg0: i32, %arg1: i32, %arg2: i32) -> (i32, i32) {
    %c0_i32 = arith.constant 0 : i32
    return %arg0, %arg2 : i32, i32
  }
  func.func @transform_1(%arg0: i32, %arg1: i32, %arg2: i32) -> (i32, i32) {
    %c0_i32 = arith.constant 0 : i32
    return %arg2, %arg1 : i32, i32
  }
  func.func @transform_2(%arg0: i32, %arg1: i32, %arg2: i32) -> (i32, i32) {
    %c0_i32 = arith.constant 0 : i32
    %c0_i32_0 = arith.constant 0 : i32
    return %c0_i32, %arg1 : i32, i32
  }
  func.func @transform_3(%arg0: i32, %arg1: i32, %arg2: i32) -> (i32, i32) {
    %c0_i32 = arith.constant 0 : i32
    return %arg0, %arg1 : i32, i32
  }
  func.func @transform_4(%arg0: i32, %arg1: i32, %arg2: i32) -> (i32, i32) {
    %c0_i32 = arith.constant 0 : i32
    %c0_i32_0 = arith.constant 0 : i32
    return %c0_i32, %arg1 : i32, i32
  }
  func.func @transform_5(%arg0: i32, %arg1: i32, %arg2: i32) -> (i32, i32) {
    %c0_i32 = arith.constant 0 : i32
    %c0_i32_0 = arith.constant 0 : i32
    return %c0_i32, %arg1 : i32, i32
  }
  func.func @transform_6(%arg0: i32, %arg1: i32, %arg2: i32) -> (i32, i32) {
    %c0_i32 = arith.constant 0 : i32
    return %arg0, %arg1 : i32, i32
  }
}

</mosaic_0001>

<llo_original>
// kernel: encoder_forward.10
$region0: #{encoder_forward.10}
  #allocation0 [shape = 'u32[]', space=smem, size = 0x4, offset = 0x4, fixed_abs, tag = 'smem constant byte address 0x4 - core index']
  #allocation1 [shape = 'u32[144,128]{1,0:T(1,128)}', space=vmem, size = 0x12000, scoped, tag = 'internal scratch']
  #allocation2 [shape = 'bf16[16,32]{1,0:T(16,128)(2,1)}', space=vmem, size = 0x1000, scoped, tag = 'scratch operand']
  %s0 = inlined_call_operand.vmem [shape: f32[16,32], index: 0, kind: input, shape index: {}]
  %s1 = inlined_call_operand.vmem [shape: f32[1,32], index: 1, kind: input, shape index: {}]
  %s2 = inlined_call_operand.vmem [shape: f32[1,32], index: 2, kind: input, shape index: {}]
  %s3 = inlined_call_operand.vmem [shape: bf16[32,96], index: 3, kind: input, shape index: {}]
  %s4 = inlined_call_operand.vmem [shape: f32[1,96], index: 4, kind: input, shape index: {}]
  %s5 = inlined_call_operand.vmem [shape: bf16[16,96], index: 5, kind: output, shape index: {}]
  %s6 = sld [smem:[#allocation0]]
  $region34: #{encoder_forward.10} parent=0
    _
  %s8 = ssub.s32 1, %s6
  %s9 = scalar_select 0, %s8, %s6
  // Predicated region
  $region2: #{encoder_forward.10} parent=0 // pred_check
    _
  $region3: #{encoder_forward.10} parent=0 // pred_check_branch
    %11 = sbr.rel (0) target = $region5
  $region4: #{encoder_forward.10} parent=0 // pred_region
    _
  $region5: #{encoder_forward.10} parent=0 // pred_fallthru
    _
  // Predicated region
  $region6: #{encoder_forward.10} parent=0 // pred_check
    _
  $region7: #{encoder_forward.10} parent=0 // pred_check_branch
    %13 = sbr.rel (0) target = $region9
  $region8: #{encoder_forward.10} parent=0 // pred_region
    _
  $region9: #{encoder_forward.10} parent=0 // pred_fallthru
    _
  // Predicated region
  $region10: #{encoder_forward.10} parent=0 // pred_check
    _
  $region11: #{encoder_forward.10} parent=0 // pred_check_branch
    %15 = sbr.rel (0) target = $region13
  $region12: #{encoder_forward.10} parent=0 // pred_region
    _
  $region13: #{encoder_forward.10} parent=0 // pred_fallthru
    _
  // Predicated region
  $region14: #{encoder_forward.10} parent=0 // pred_check
    _
  $region15: #{encoder_forward.10} parent=0 // pred_check_branch
    %17 = sbr.rel (0) target = $region17
  $region16: #{encoder_forward.10} parent=0 // pred_region
    _
  $region17: #{encoder_forward.10} parent=0 // pred_fallthru
    _
  // Predicated region
  $region18: #{encoder_forward.10} parent=0 // pred_check
    _
  $region19: #{encoder_forward.10} parent=0 // pred_check_branch
    %19 = sbr.rel (0) target = $region21
  $region20: #{encoder_forward.10} parent=0 // pred_region
    _
  $region21: #{encoder_forward.10} parent=0 // pred_fallthru
    _
  %p21 = scmp.eq.s32.totalorder 0, 0
  // Predicated region
  $region22: #{encoder_forward.10} parent=0 // pred_check
    %p22 = pneg %p21
  $region23: #{encoder_forward.10} parent=0 // pred_check_branch
    %24 = sbr.rel (%p22) target = $region25
  $region24: #{encoder_forward.10} parent=0 // pred_region
    %v25 = vld [vmem:[%s0] sm:$0xff]
    %v26 = vld [vmem:[%s0 + $0x8] sm:$0xff]
    %vm27 = vcmask 261120
    %v28 = vsel %vm27, %v25, 0.0
    %29 = vadd.xlane.f32.xlu0 %v28
    %v30 = vpop.xlane.xlu0 %29
    %v31 = vsel %vm27, %v26, 0.0
    %32 = vadd.xlane.f32.xlu0 %v31
    %v33 = vpop.xlane.xlu0 %32
    %v34 = vrcp.pop 32.0
    %v35 = vmul.f32 %v30, %v34
    %v36 = vmul.f32 %v33, %v34
    %v37 = vsub.f32 %v25, %v35
    %v38 = vsub.f32 %v26, %v36
    %v39 = vmul.f32 %v37, %v37
    %v40 = vmul.f32 %v38, %v38
    %v41 = vsel %vm27, %v39, 0.0
    %42 = vadd.xlane.f32.xlu0 %v41
    %v43 = vpop.xlane.xlu0 %42
    %v44 = vsel %vm27, %v40, 0.0
    %45 = vadd.xlane.f32.xlu0 %v44
    %v46 = vpop.xlane.xlu0 %45
    %v47 = vmul.f32 %v43, 0.032258064
    %v48 = vmul.f32 %v46, 0.032258064
    %v49 = vrsqrt.pop %v47
    %v50 = vmul.f32 %v47, %v49
    %vm51 = vcmp.eq.f32.partialorder %v47, inf
    %v52 = vsel %vm51, %v47, %v50
    %vm53 = vcmp.eq.f32.partialorder %v47, 0.0
    %v54 = vand.u32 %v47, 2147483648
    %v55 = vsel %vm53, %v54, %v52
    %v56 = vrsqrt.pop %v48
    %v57 = vmul.f32 %v48, %v56
    %vm58 = vcmp.eq.f32.partialorder %v48, inf
    %v59 = vsel %vm58, %v48, %v57
    %vm60 = vcmp.eq.f32.partialorder %v48, 0.0
    %v61 = vand.u32 %v48, 2147483648
    %v62 = vsel %vm60, %v61, %v59
    %v63 = vld [vmem:[%s1] sm:$0x1]
    %v65 = vlaneseq
    %v66 = vshrl.u32 %v65, 7
    %v67 = vsub.s32 0, %v66
    %v68 = vrot.slane %v63, %v67
    %v70 = vmul.f32 %v68, %v37
    %v71 = vmul.f32 %v68, %v38
    %v72 = vadd.f32 %v55, 1e-06
    %v73 = vadd.f32 %v62, 1e-06
    %v74 = vrcp.pop %v72
    %v75 = vmul.f32 %v70, %v74
    %v76 = vrcp.pop %v73
    %v77 = vmul.f32 %v71, %v76
    %v78 = vld [vmem:[%s2] sm:$0x1]
    %v80 = vlaneseq
    %v81 = vshrl.u32 %v80, 7
    %v82 = vsub.s32 0, %v81
    %v83 = vrot.slane %v78, %v82
    %v85 = vadd.f32 %v75, %v83
    %v86 = vadd.f32 %v77, %v83
    %v87 = vpack.c.bf16 %v86, %v85
    %88 = vst.msk [vmem:[#allocation2] sm:$0xff] %vm27, %v87
  $region25: #{encoder_forward.10} parent=0 // pred_fallthru
    _
  %v89 = vld [vmem:[#allocation2] sm:$0xff]
  %v90 = vld [vmem:[%s3] sm:$0xf]
  %v91 = vld [vmem:[%s3 + $0x4] sm:$0xf]
  %v92 = vld [vmem:[%s3 + $0x8] sm:$0xf]
  %v93 = vld [vmem:[%s3 + $0xc] sm:$0xf]
  %v94 = vld [vmem:[%s4] sm:$0x1]
  %v96 = vlaneseq
  %v97 = vshrl.u32 %v96, 7
  %v98 = vsub.s32 0, %v97
  %v99 = vrot.slane %v94, %v98
  %v105 = vunpack.c.l.b16 %v90
  %v106 = vunpack.c.l.b16 %v91
  %v107 = vunpack.c.l.b16 %v92
  %v108 = vunpack.c.l.b16 %v93
  %v109 = vpack.c.b16 %v106, %v105
  %v110 = vpack.c.b16 %v108, %v107
  %vm113 = vcmask 261120
  %v115 = vsel %vm113, %v89, 0
  %117 = vmatprep.subr.bf16.mxu0 0
  %118 = vmatpush1.bf16.msra.mxu0 %v109
  %119 = vmatprep.subr.bf16.mxu0 0
  %120 = vmatpush1.bf16.msra.mxu0 %v110
  %121 = vmatprep.subr.bf16.mxu0 0
  %122 = vmatpush1.bf16.msra.mxu0 0
  %123 = vmatprep.subr.bf16.mxu0 0
  %124 = vmatpush1.bf16.msra.mxu0 0
  %125 = vmatprep.subr.bf16.mxu0 0
  %126 = vmatpush1.bf16.msra.mxu0 0
  %127 = vmatprep.subr.bf16.mxu0 0
  %128 = vmatpush1.bf16.msra.mxu0 0
  %129 = vmatprep.subr.bf16.mxu0 0
  %130 = vmatpush1.bf16.msra.mxu0 0
  %131 = vmatprep.subr.bf16.mxu0 0
  %132 = vmatpush1.bf16.msra.mxu0 0
  %133 = vmatprep.subr.bf16.mxu0 0
  %134 = vmatpush1.bf16.msra.mxu0 0
  %135 = vmatprep.subr.bf16.mxu0 0
  %136 = vmatpush1.bf16.msra.mxu0 0
  %137 = vmatprep.subr.bf16.mxu0 0
  %138 = vmatpush1.bf16.msra.mxu0 0
  %139 = vmatprep.subr.bf16.mxu0 0
  %140 = vmatpush1.bf16.msra.mxu0 0
  %141 = vmatprep.subr.bf16.mxu0 0
  %142 = vmatpush1.bf16.msra.mxu0 0
  %143 = vmatprep.subr.bf16.mxu0 0
  %144 = vmatpush1.bf16.msra.mxu0 0
  %145 = vmatprep.subr.bf16.mxu0 0
  %146 = vmatpush1.bf16.msra.mxu0 0
  %147 = vmatprep.subr.bf16.mxu0 0
  %148 = vmatpush1.bf16.msra.mxu0 0
  %149 = vmatprep.mubr.bf16.mxu0 0
  %150 = vmatmul.mubr.bf16.gmra.mrb[0].mxu0 %v115
  %v151 = vpop.f32.mrb[0].mxu0
  %v152 = vadd.f32 %v99, %v151
  %v153 = vpop.f32.mrb[0].mxu0
  %v154 = vpop.f32.mrb[0].mxu0
  %v155 = vadd.f32 %v99, %v154
  %v156 = vpop.f32.mrb[0].mxu0
  %157 = vdwg.mxu0
  %v158 = vpack.c.bf16 %v155, %v152
  %v160 = vunpack.c.l.b16 %v158
  %v161 = vunpack.c.h.b16 %v158
  %v162 = vpack.c.b16 %v160, %v160
  %v163 = vpack.c.b16 %v161, %v161
  %vm166 = vcmask 781312
  %167 = vst.msk [vmem:[%s5] sm:$0xf] %vm166, %v162
  %168 = vst.msk [vmem:[%s5 + $0x4] sm:$0xf] %vm166, %v163
  // Predicated region
  $region26: #{encoder_forward.10} parent=0 // pred_check
    _
  $region27: #{encoder_forward.10} parent=0 // pred_check_branch
    %170 = sbr.rel (0) target = $region29
  $region28: #{encoder_forward.10} parent=0 // pred_region
    _
  $region29: #{encoder_forward.10} parent=0 // pred_fallthru
    _
  // Predicated region
  $region30: #{encoder_forward.10} parent=0 // pred_check
    _
  $region31: #{encoder_forward.10} parent=0 // pred_check_branch
    %172 = sbr.rel (0) target = $region33
  $region32: #{encoder_forward.10} parent=0 // pred_region
    _
  $region33: #{encoder_forward.10} parent=0 // pred_fallthru
    _

// kernel: encoder_forward.13
$region0: #{encoder_forward.13}
  #allocation0 [shape = 'u32[]', space=smem, size = 0x4, offset = 0x4, fixed_abs, tag = 'smem constant byte address 0x4 - core index']
  #allocation1 [shape = 'u32[144,128]{1,0:T(1,128)}', space=vmem, size = 0x12000, scoped, tag = 'internal scratch']
  #allocation2 [shape = 'bf16[16,32]{1,0:T(16,128)(2,1)}', space=vmem, size = 0x1000, scoped, tag = 'scratch operand']
  %s0 = inlined_call_operand.vmem [shape: f32[16,32], index: 0, kind: input, shape index: {}]
  %s1 = inlined_call_operand.vmem [shape: f32[1,32], index: 1, kind: input, shape index: {}]
  %s2 = inlined_call_operand.vmem [shape: f32[1,32], index: 2, kind: input, shape index: {}]
  %s3 = inlined_call_operand.vmem [shape: bf16[32,64], index: 3, kind: input, shape index: {}]
  %s4 = inlined_call_operand.vmem [shape: f32[1,64], index: 4, kind: input, shape index: {}]
  %s5 = inlined_call_operand.vmem [shape: bf16[16,64], index: 5, kind: output, shape index: {}]
  %s6 = sld [smem:[#allocation0]]
  $region34: #{encoder_forward.13} parent=0
    _
  %s8 = ssub.s32 1, %s6
  %s9 = scalar_select 0, %s8, %s6
  // Predicated region
  $region2: #{encoder_forward.13} parent=0 // pred_check
    _
  $region3: #{encoder_forward.13} parent=0 // pred_check_branch
    %11 = sbr.rel (0) target = $region5
  $region4: #{encoder_forward.13} parent=0 // pred_region
    _
  $region5: #{encoder_forward.13} parent=0 // pred_fallthru
    _
  // Predicated region
  $region6: #{encoder_forward.13} parent=0 // pred_check
    _
  $region7: #{encoder_forward.13} parent=0 // pred_check_branch
    %13 = sbr.rel (0) target = $region9
  $region8: #{encoder_forward.13} parent=0 // pred_region
    _
  $region9: #{encoder_forward.13} parent=0 // pred_fallthru
    _
  // Predicated region
  $region10: #{encoder_forward.13} parent=0 // pred_check
    _
  $region11: #{encoder_forward.13} parent=0 // pred_check_branch
    %15 = sbr.rel (0) target = $region13
  $region12: #{encoder_forward.13} parent=0 // pred_region
    _
  $region13: #{encoder_forward.13} parent=0 // pred_fallthru
    _
  // Predicated region
  $region14: #{encoder_forward.13} parent=0 // pred_check
    _
  $region15: #{encoder_forward.13} parent=0 // pred_check_branch
    %17 = sbr.rel (0) target = $region17
  $region16: #{encoder_forward.13} parent=0 // pred_region
    _
  $region17: #{encoder_forward.13} parent=0 // pred_fallthru
    _
  // Predicated region
  $region18: #{encoder_forward.13} parent=0 // pred_check
    _
  $region19: #{encoder_forward.13} parent=0 // pred_check_branch
    %19 = sbr.rel (0) target = $region21
  $region20: #{encoder_forward.13} parent=0 // pred_region
    _
  $region21: #{encoder_forward.13} parent=0 // pred_fallthru
    _
  %p21 = scmp.eq.s32.totalorder 0, 0
  // Predicated region
  $region22: #{encoder_forward.13} parent=0 // pred_check
    %p22 = pneg %p21
  $region23: #{encoder_forward.13} parent=0 // pred_check_branch
    %24 = sbr.rel (%p22) target = $region25
  $region24: #{encoder_forward.13} parent=0 // pred_region
    %v25 = vld [vmem:[%s0] sm:$0xff]
    %v26 = vld [vmem:[%s0 + $0x8] sm:$0xff]
    %vm27 = vcmask 261120
    %v28 = vsel %vm27, %v25, 0.0
    %29 = vadd.xlane.f32.xlu0 %v28
    %v30 = vpop.xlane.xlu0 %29
    %v31 = vsel %vm27, %v26, 0.0
    %32 = vadd.xlane.f32.xlu0 %v31
    %v33 = vpop.xlane.xlu0 %32
    %v34 = vrcp.pop 32.0
    %v35 = vmul.f32 %v30, %v34
    %v36 = vmul.f32 %v33, %v34
    %v37 = vsub.f32 %v25, %v35
    %v38 = vsub.f32 %v26, %v36
    %v39 = vmul.f32 %v37, %v37
    %v40 = vmul.f32 %v38, %v38
    %v41 = vsel %vm27, %v39, 0.0
    %42 = vadd.xlane.f32.xlu0 %v41
    %v43 = vpop.xlane.xlu0 %42
    %v44 = vsel %vm27, %v40, 0.0
    %45 = vadd.xlane.f32.xlu0 %v44
    %v46 = vpop.xlane.xlu0 %45
    %v47 = vmul.f32 %v43, 0.032258064
    %v48 = vmul.f32 %v46, 0.032258064
    %v49 = vrsqrt.pop %v47
    %v50 = vmul.f32 %v47, %v49
    %vm51 = vcmp.eq.f32.partialorder %v47, inf
    %v52 = vsel %vm51, %v47, %v50
    %vm53 = vcmp.eq.f32.partialorder %v47, 0.0
    %v54 = vand.u32 %v47, 2147483648
    %v55 = vsel %vm53, %v54, %v52
    %v56 = vrsqrt.pop %v48
    %v57 = vmul.f32 %v48, %v56
    %vm58 = vcmp.eq.f32.partialorder %v48, inf
    %v59 = vsel %vm58, %v48, %v57
    %vm60 = vcmp.eq.f32.partialorder %v48, 0.0
    %v61 = vand.u32 %v48, 2147483648
    %v62 = vsel %vm60, %v61, %v59
    %v63 = vld [vmem:[%s1] sm:$0x1]
    %v65 = vlaneseq
    %v66 = vshrl.u32 %v65, 7
    %v67 = vsub.s32 0, %v66
    %v68 = vrot.slane %v63, %v67
    %v70 = vmul.f32 %v68, %v37
    %v71 = vmul.f32 %v68, %v38
    %v72 = vadd.f32 %v55, 1e-06
    %v73 = vadd.f32 %v62, 1e-06
    %v74 = vrcp.pop %v72
    %v75 = vmul.f32 %v70, %v74
    %v76 = vrcp.pop %v73
    %v77 = vmul.f32 %v71, %v76
    %v78 = vld [vmem:[%s2] sm:$0x1]
    %v80 = vlaneseq
    %v81 = vshrl.u32 %v80, 7
    %v82 = vsub.s32 0, %v81
    %v83 = vrot.slane %v78, %v82
    %v85 = vadd.f32 %v75, %v83
    %v86 = vadd.f32 %v77, %v83
    %v87 = vpack.c.bf16 %v86, %v85
    %88 = vst.msk [vmem:[#allocation2] sm:$0xff] %vm27, %v87
  $region25: #{encoder_forward.13} parent=0 // pred_fallthru
    _
  %v89 = vld [vmem:[#allocation2] sm:$0xff]
  %v90 = vld [vmem:[%s3] sm:$0xf]
  %v91 = vld [vmem:[%s3 + $0x4] sm:$0xf]
  %v92 = vld [vmem:[%s3 + $0x8] sm:$0xf]
  %v93 = vld [vmem:[%s3 + $0xc] sm:$0xf]
  %v94 = vld [vmem:[%s4] sm:$0x1]
  %v96 = vlaneseq
  %v97 = vshrl.u32 %v96, 7
  %v98 = vsub.s32 0, %v97
  %v99 = vrot.slane %v94, %v98
  %v105 = vunpack.c.l.b16 %v90
  %v106 = vunpack.c.l.b16 %v91
  %v107 = vunpack.c.l.b16 %v92
  %v108 = vunpack.c.l.b16 %v93
  %v109 = vpack.c.b16 %v106, %v105
  %v110 = vpack.c.b16 %v108, %v107
  %vm113 = vcmask 261120
  %v115 = vsel %vm113, %v89, 0
  %117 = vmatprep.subr.bf16.mxu0 0
  %118 = vmatpush1.bf16.msra.mxu0 %v109
  %119 = vmatprep.subr.bf16.mxu0 0
  %120 = vmatpush1.bf16.msra.mxu0 %v110
  %121 = vmatprep.subr.bf16.mxu0 0
  %122 = vmatpush1.bf16.msra.mxu0 0
  %123 = vmatprep.subr.bf16.mxu0 0
  %124 = vmatpush1.bf16.msra.mxu0 0
  %125 = vmatprep.subr.bf16.mxu0 0
  %126 = vmatpush1.bf16.msra.mxu0 0
  %127 = vmatprep.subr.bf16.mxu0 0
  %128 = vmatpush1.bf16.msra.mxu0 0
  %129 = vmatprep.subr.bf16.mxu0 0
  %130 = vmatpush1.bf16.msra.mxu0 0
  %131 = vmatprep.subr.bf16.mxu0 0
  %132 = vmatpush1.bf16.msra.mxu0 0
  %133 = vmatprep.subr.bf16.mxu0 0
  %134 = vmatpush1.bf16.msra.mxu0 0
  %135 = vmatprep.subr.bf16.mxu0 0
  %136 = vmatpush1.bf16.msra.mxu0 0
  %137 = vmatprep.subr.bf16.mxu0 0
  %138 = vmatpush1.bf16.msra.mxu0 0
  %139 = vmatprep.subr.bf16.mxu0 0
  %140 = vmatpush1.bf16.msra.mxu0 0
  %141 = vmatprep.subr.bf16.mxu0 0
  %142 = vmatpush1.bf16.msra.mxu0 0
  %143 = vmatprep.subr.bf16.mxu0 0
  %144 = vmatpush1.bf16.msra.mxu0 0
  %145 = vmatprep.subr.bf16.mxu0 0
  %146 = vmatpush1.bf16.msra.mxu0 0
  %147 = vmatprep.subr.bf16.mxu0 0
  %148 = vmatpush1.bf16.msra.mxu0 0
  %149 = vmatprep.mubr.bf16.mxu0 0
  %150 = vmatmul.mubr.bf16.gmra.mrb[0].mxu0 %v115
  %v151 = vpop.f32.mrb[0].mxu0
  %v152 = vadd.f32 %v99, %v151
  %v153 = vpop.f32.mrb[0].mxu0
  %v154 = vpop.f32.mrb[0].mxu0
  %v155 = vadd.f32 %v99, %v154
  %v156 = vpop.f32.mrb[0].mxu0
  %157 = vdwg.mxu0
  %v158 = vmax.f32 %v152, 0.0
  %v159 = vmax.f32 %v155, 0.0
  %v160 = vpack.c.bf16 %v159, %v158
  %v162 = vunpack.c.l.b16 %v160
  %v163 = vunpack.c.h.b16 %v160
  %v164 = vpack.c.b16 %v162, %v162
  %v165 = vpack.c.b16 %v163, %v163
  %vm168 = vcmask 519168
  %169 = vst.msk [vmem:[%s5] sm:$0xf] %vm168, %v164
  %170 = vst.msk [vmem:[%s5 + $0x4] sm:$0xf] %vm168, %v165
  // Predicated region
  $region26: #{encoder_forward.13} parent=0 // pred_check
    _
  $region27: #{encoder_forward.13} parent=0 // pred_check_branch
    %172 = sbr.rel (0) target = $region29
  $region28: #{encoder_forward.13} parent=0 // pred_region
    _
  $region29: #{encoder_forward.13} parent=0 // pred_fallthru
    _
  // Predicated region
  $region30: #{encoder_forward.13} parent=0 // pred_check
    _
  $region31: #{encoder_forward.13} parent=0 // pred_check_branch
    %174 = sbr.rel (0) target = $region33
  $region32: #{encoder_forward.13} parent=0 // pred_region
    _
  $region33: #{encoder_forward.13} parent=0 // pred_fallthru
    _

// kernel: encoder_forward.12
$region0: #{encoder_forward.12}
  #allocation0 [shape = 'u32[]', space=smem, size = 0x4, offset = 0x4, fixed_abs, tag = 'smem constant byte address 0x4 - core index']
  #allocation1 [shape = 'u32[144,128]{1,0:T(1,128)}', space=vmem, size = 0x12000, scoped, tag = 'internal scratch']
  #allocation2 [shape = 'f32[16,32]{1,0:T(8,128)}', space=vmem, size = 0x2000, scoped, tag = 'scratch operand']
  %s0 = inlined_call_operand.vmem [shape: bf16[16,32], index: 0, kind: input, shape index: {}]
  %s1 = inlined_call_operand.vmem [shape: bf16[32,32], index: 1, kind: input, shape index: {}]
  %s2 = inlined_call_operand.vmem [shape: f32[1,32], index: 2, kind: input, shape index: {}]
  %s3 = inlined_call_operand.vmem [shape: f32[16,32], index: 3, kind: input, shape index: {}]
  %s4 = inlined_call_operand.vmem [shape: f32[16,32], index: 4, kind: output, shape index: {}]
  %s5 = sld [smem:[#allocation0]]
  $region34: #{encoder_forward.12} parent=0
    _
  %s7 = ssub.s32 1, %s5
  %s8 = scalar_select 0, %s7, %s5
  // Predicated region
  $region2: #{encoder_forward.12} parent=0 // pred_check
    _
  $region3: #{encoder_forward.12} parent=0 // pred_check_branch
    %10 = sbr.rel (0) target = $region5
  $region4: #{encoder_forward.12} parent=0 // pred_region
    _
  $region5: #{encoder_forward.12} parent=0 // pred_fallthru
    _
  // Predicated region
  $region6: #{encoder_forward.12} parent=0 // pred_check
    _
  $region7: #{encoder_forward.12} parent=0 // pred_check_branch
    %12 = sbr.rel (0) target = $region9
  $region8: #{encoder_forward.12} parent=0 // pred_region
    _
  $region9: #{encoder_forward.12} parent=0 // pred_fallthru
    _
  // Predicated region
  $region10: #{encoder_forward.12} parent=0 // pred_check
    _
  $region11: #{encoder_forward.12} parent=0 // pred_check_branch
    %14 = sbr.rel (0) target = $region13
  $region12: #{encoder_forward.12} parent=0 // pred_region
    _
  $region13: #{encoder_forward.12} parent=0 // pred_fallthru
    _
  // Predicated region
  $region14: #{encoder_forward.12} parent=0 // pred_check
    _
  $region15: #{encoder_forward.12} parent=0 // pred_check_branch
    %16 = sbr.rel (0) target = $region17
  $region16: #{encoder_forward.12} parent=0 // pred_region
    _
  $region17: #{encoder_forward.12} parent=0 // pred_fallthru
    _
  %p18 = scmp.eq.s32.totalorder 0, 0
  // Predicated region
  $region18: #{encoder_forward.12} parent=0 // pred_check
    %p19 = pneg %p18
  $region19: #{encoder_forward.12} parent=0 // pred_check_branch
    %21 = sbr.rel (%p19) target = $region21
  $region20: #{encoder_forward.12} parent=0 // pred_region
    %vm22 = vcmask 261120
    %23 = vst.msk [vmem:[#allocation2] sm:$0xff] %vm22, 0.0
    %24 = vst.msk [vmem:[#allocation2 + $0x8] sm:$0xff] %vm22, 0.0
  $region21: #{encoder_forward.12} parent=0 // pred_fallthru
    _
  %v25 = vld [vmem:[#allocation2] sm:$0xff]
  %v26 = vld [vmem:[#allocation2 + $0x8] sm:$0xff]
  %v27 = vld [vmem:[%s0] sm:$0xf]
  %v28 = vld [vmem:[%s0 + $0x4] sm:$0xf]
  %v29 = vld [vmem:[%s1] sm:$0xf]
  %v30 = vld [vmem:[%s1 + $0x4] sm:$0xf]
  %v31 = vld [vmem:[%s1 + $0x8] sm:$0xf]
  %v32 = vld [vmem:[%s1 + $0xc] sm:$0xf]
  %v35 = vunpack.c.l.b16 %v27
  %v36 = vunpack.c.l.b16 %v28
  %v37 = vpack.c.b16 %v36, %v35
  %v42 = vunpack.c.l.b16 %v29
  %v43 = vunpack.c.l.b16 %v30
  %v44 = vunpack.c.l.b16 %v31
  %v45 = vunpack.c.l.b16 %v32
  %v46 = vpack.c.b16 %v43, %v42
  %v47 = vpack.c.b16 %v45, %v44
  %vm50 = vcmask 261120
  %v52 = vsel %vm50, %v37, 0
  %54 = vmatprep.subr.bf16.mxu0 0
  %55 = vmatpush1.bf16.msra.mxu0 %v46
  %56 = vmatprep.subr.bf16.mxu0 0
  %57 = vmatpush1.bf16.msra.mxu0 %v47
  %58 = vmatprep.subr.bf16.mxu0 0
  %59 = vmatpush1.bf16.msra.mxu0 0
  %60 = vmatprep.subr.bf16.mxu0 0
  %61 = vmatpush1.bf16.msra.mxu0 0
  %62 = vmatprep.subr.bf16.mxu0 0
  %63 = vmatpush1.bf16.msra.mxu0 0
  %64 = vmatprep.subr.bf16.mxu0 0
  %65 = vmatpush1.bf16.msra.mxu0 0
  %66 = vmatprep.subr.bf16.mxu0 0
  %67 = vmatpush1.bf16.msra.mxu0 0
  %68 = vmatprep.subr.bf16.mxu0 0
  %69 = vmatpush1.bf16.msra.mxu0 0
  %70 = vmatprep.subr.bf16.mxu0 0
  %71 = vmatpush1.bf16.msra.mxu0 0
  %72 = vmatprep.subr.bf16.mxu0 0
  %73 = vmatpush1.bf16.msra.mxu0 0
  %74 = vmatprep.subr.bf16.mxu0 0
  %75 = vmatpush1.bf16.msra.mxu0 0
  %76 = vmatprep.subr.bf16.mxu0 0
  %77 = vmatpush1.bf16.msra.mxu0 0
  %78 = vmatprep.subr.bf16.mxu0 0
  %79 = vmatpush1.bf16.msra.mxu0 0
  %80 = vmatprep.subr.bf16.mxu0 0
  %81 = vmatpush1.bf16.msra.mxu0 0
  %82 = vmatprep.subr.bf16.mxu0 0
  %83 = vmatpush1.bf16.msra.mxu0 0
  %84 = vmatprep.subr.bf16.mxu0 0
  %85 = vmatpush1.bf16.msra.mxu0 0
  %86 = vmatprep.mubr.bf16.mxu0 0
  %87 = vmatmul.mubr.bf16.gmra.mrb[0].mxu0 %v52
  %v88 = vpop.f32.mrb[0].mxu0
  %v89 = vadd.f32 0.0, %v88
  %v90 = vpop.f32.mrb[0].mxu0
  %v91 = vpop.f32.mrb[0].mxu0
  %v92 = vadd.f32 0.0, %v91
  %v93 = vpop.f32.mrb[0].mxu0
  %94 = vdwg.mxu0
  %v95 = vadd.f32 %v25, %v89
  %v96 = vadd.f32 %v26, %v92
  %97 = vst.msk [vmem:[#allocation2] sm:$0xff] %vm50, %v95
  %98 = vst.msk [vmem:[#allocation2 + $0x8] sm:$0xff] %vm50, %v96
  // Predicated region
  $region22: #{encoder_forward.12} parent=0 // pred_check
    %p99 = pneg %p18
  $region23: #{encoder_forward.12} parent=0 // pred_check_branch
    %101 = sbr.rel (%p99) target = $region25
  $region24: #{encoder_forward.12} parent=0 // pred_region
    %v102 = vld [vmem:[#allocation2] sm:$0xff]
    %v103 = vld [vmem:[#allocation2 + $0x8] sm:$0xff]
    %v104 = vld [vmem:[%s2] sm:$0x1]
    %v106 = vlaneseq
    %v107 = vshrl.u32 %v106, 7
    %v108 = vsub.s32 0, %v107
    %v109 = vrot.slane %v104, %v108
    %v111 = vadd.f32 %v102, %v109
    %v112 = vadd.f32 %v103, %v109
    %v113 = vld [vmem:[%s3] sm:$0xff]
    %v114 = vld [vmem:[%s3 + $0x8] sm:$0xff]
    %v115 = vadd.f32 %v111, %v113
    %v116 = vadd.f32 %v112, %v114
    %117 = vst.msk [vmem:[%s4] sm:$0xff] %vm50, %v115
    %118 = vst.msk [vmem:[%s4 + $0x8] sm:$0xff] %vm50, %v116
  $region25: #{encoder_forward.12} parent=0 // pred_fallthru
    _
  // Predicated region
  $region26: #{encoder_forward.12} parent=0 // pred_check
    _
  $region27: #{encoder_forward.12} parent=0 // pred_check_branch
    %120 = sbr.rel (0) target = $region29
  $region28: #{encoder_forward.12} parent=0 // pred_region
    _
  $region29: #{encoder_forward.12} parent=0 // pred_fallthru
    _
  // Predicated region
  $region30: #{encoder_forward.12} parent=0 // pred_check
    _
  $region31: #{encoder_forward.12} parent=0 // pred_check_branch
    %122 = sbr.rel (0) target = $region33
  $region32: #{encoder_forward.12} parent=0 // pred_region
    _
  $region33: #{encoder_forward.12} parent=0 // pred_fallthru
    _

// kernel: encoder_forward.11
$region0: #{encoder_forward.11}
  #allocation0 [shape = 'u32[]', space=smem, size = 0x4, offset = 0x4, fixed_abs, tag = 'smem constant byte address 0x4 - core index']
  #allocation1 [shape = 'u32[144,128]{1,0:T(1,128)}', space=vmem, size = 0x12000, scoped, tag = 'internal scratch']
  %s0 = inlined_call_operand.vmem [shape: bf16[2,8,96], index: 0, kind: input, shape index: {}, may-alias: {0,1}]
  %s1 = inlined_call_operand.vmem [shape: bf16[2,8,96], index: 1, kind: input, shape index: {}, may-alias: {0,1}]
  %s2 = inlined_call_operand.vmem [shape: f32[2,1,8], index: 2, kind: input, shape index: {}]
  %s3 = inlined_call_operand.vmem [shape: bf16[2,8,32], index: 3, kind: output, shape index: {}]
  %s4 = sld [smem:[#allocation0]]
  $region45: #{encoder_forward.11} parent=0
    _
  %s6 = ssub.s32 1, %s4
  %s7 = scalar_select 0, %s6, %s4
  loop: start=0, step=1, limit=4
  $region2: #{encoder_forward.11} parent=0 // loop_pre_header
    _
  $region3: #{encoder_forward.11} parent=0 // loop_header
    %s9 = sphi 0, %s13
    %p10 = scmp.ge.s32.totalorder %s9, 4
    %s16 = sphi 0, %s28
    %s17 = sphi 0, %s24
    %s18 = sphi 0, %s16
    %s19 = sphi 0, %s17
    %s20 = sphi 0, %s18
    %s21 = sphi 0, %s19
    %s33 = sphi 0, %s35
    %s36 = sphi 0, %s33
    %s37 = sphi 0, %s36
    %s53 = sphi 0, %s37
    %s59 = sphi 0, %s61
    %s62 = sphi 0, %s59
    %s63 = sphi 0, %s62
    %s79 = sphi 0, %s63
    %s85 = sphi 0, %s87
    %s88 = sphi 0, %s85
    %s89 = sphi 0, %s88
    %s105 = sphi 0, %s89
    %s113 = sphi 0, %s115
    %s116 = sphi 0, %s113
    %s117 = sphi 0, %s116
    %s133 = sphi 0, %s117
  $region4: #{encoder_forward.11} parent=0 // loop_header_branch
    %12 = sbr.rel (%p10) target = $region8
  $region5: #{encoder_forward.11} parent=0 // loop_body
    %s14 = ssub.s32 %s9, 1
    %s15 = ssub.s32 %s9, 2
    %s22 = sadd.s32 1, %s17
    %p23 = scmp.ge.s32.totalorder %s22, 1
    %s24 = scalar_select %p23, 0, %s22
    %s25 = sadd.s32 1, %s16
    %s26 = scalar_select %p23, %s25, %s16
    %p27 = scmp.ge.s32.totalorder %s26, 2
    %s28 = scalar_select %p27, 0, %s26
    %s29 = ssub.s32 %s16, %s28
    %s30 = ssub.s32 %s17, %s24
    %s31 = sor.u32 %s29, %s30
    %p32 = scmp.eq.s32.totalorder %s31, 0
    %s34 = sadd.s32 %s33, 1
    %s35 = scalar_select %p32, %s33, %s34
    %p38 = pneg %p32
    %p39 = scmp.eq.s32.totalorder %s9, 1
    %p40 = por %p38, %p39
    %p41 = scmp.ne.s32.totalorder %s33, %s36
    %p42 = scmp.eq.s32.totalorder %s9, 0
    %p43 = por %p41, %p42
    %p44 = scmp.ne.s32.totalorder %s33, %s36
    %p45 = scmp.eq.s32.totalorder %s14, 1
    %p46 = por %p44, %p45
    %p47 = scmp.ne.s32.totalorder %s36, %s37
    %p48 = scmp.eq.s32.totalorder %s14, 0
    %p49 = por %p47, %p48
    %p50 = scmp.ne.s32.totalorder %s36, %s37
    %p51 = scmp.eq.s32.totalorder %s15, 1
    %p52 = por %p50, %p51
    %p54 = scmp.ne.s32.totalorder %s37, %s53
    %p55 = scmp.eq.s32.totalorder %s15, 0
    %p56 = por %p54, %p55
    %s57 = ssub.s32 %s16, %s28
    %p58 = scmp.eq.s32.totalorder %s57, 0
    %s60 = sadd.s32 %s59, 1
    %s61 = scalar_select %p58, %s59, %s60
    %p64 = pneg %p58
    %p65 = scmp.eq.s32.totalorder %s9, 1
    %p66 = por %p64, %p65
    %p67 = scmp.ne.s32.totalorder %s59, %s62
    %p68 = scmp.eq.s32.totalorder %s9, 0
    %p69 = por %p67, %p68
    %p70 = scmp.ne.s32.totalorder %s59, %s62
    %p71 = scmp.eq.s32.totalorder %s14, 1
    %p72 = por %p70, %p71
    %p73 = scmp.ne.s32.totalorder %s62, %s63
    %p74 = scmp.eq.s32.totalorder %s14, 0
    %p75 = por %p73, %p74
    %p76 = scmp.ne.s32.totalorder %s62, %s63
    %p77 = scmp.eq.s32.totalorder %s15, 1
    %p78 = por %p76, %p77
    %p80 = scmp.ne.s32.totalorder %s63, %s79
    %p81 = scmp.eq.s32.totalorder %s15, 0
    %p82 = por %p80, %p81
    %s83 = ssub.s32 %s16, %s28
    %p84 = scmp.eq.s32.totalorder %s83, 0
    %s86 = sadd.s32 %s85, 1
    %s87 = scalar_select %p84, %s85, %s86
    %p90 = pneg %p84
    %p91 = scmp.eq.s32.totalorder %s9, 1
    %p92 = por %p90, %p91
    %p93 = scmp.ne.s32.totalorder %s85, %s88
    %p94 = scmp.eq.s32.totalorder %s9, 0
    %p95 = por %p93, %p94
    %p96 = scmp.ne.s32.totalorder %s85, %s88
    %p97 = scmp.eq.s32.totalorder %s14, 1
    %p98 = por %p96, %p97
    %p99 = scmp.ne.s32.totalorder %s88, %s89
    %p100 = scmp.eq.s32.totalorder %s14, 0
    %p101 = por %p99, %p100
    %p102 = scmp.ne.s32.totalorder %s88, %s89
    %p103 = scmp.eq.s32.totalorder %s15, 1
    %p104 = por %p102, %p103
    %p106 = scmp.ne.s32.totalorder %s89, %s105
    %p107 = scmp.eq.s32.totalorder %s15, 0
    %p108 = por %p106, %p107
    %s109 = ssub.s32 %s16, %s28
    %s110 = ssub.s32 %s17, %s24
    %s111 = sor.u32 %s109, %s110
    %p112 = scmp.eq.s32.totalorder %s111, 0
    %s114 = sadd.s32 %s113, 1
    %s115 = scalar_select %p112, %s113, %s114
    %p118 = pneg %p112
    %p119 = scmp.eq.s32.totalorder %s9, 1
    %p120 = por %p118, %p119
    %p121 = scmp.ne.s32.totalorder %s113, %s116
    %p122 = scmp.eq.s32.totalorder %s9, 0
    %p123 = por %p121, %p122
    %p124 = scmp.ne.s32.totalorder %s113, %s116
    %p125 = scmp.eq.s32.totalorder %s14, 1
    %p126 = por %p124, %p125
    %p127 = scmp.ne.s32.totalorder %s116, %s117
    %p128 = scmp.eq.s32.totalorder %s14, 0
    %p129 = por %p127, %p128
    %p130 = scmp.ne.s32.totalorder %s116, %s117
    %p131 = scmp.eq.s32.totalorder %s15, 1
    %p132 = por %p130, %p131
    %p134 = scmp.ne.s32.totalorder %s117, %s133
    %p135 = scmp.eq.s32.totalorder %s15, 0
    %p136 = por %p134, %p135
    %p137 = scmp.le.s32.totalorder 1, %s9
    %p138 = scmp.lt.s32.totalorder %s9, 3
    %p139 = pnand %p137, %p138
    %p140 = pneg %p139
    // Predicated region
    $region9: #{encoder_forward.11} parent=5 // pred_check
      _
    $region10: #{encoder_forward.11} parent=5 // pred_check_branch
      %142 = sbr.rel (%p139) target = $region12
    $region11: #{encoder_forward.11} parent=5 // pred_region
      %s143 = ssub.s32 %s9, 1
    $region12: #{encoder_forward.11} parent=5 // pred_fallthru
      _
    %p144 = scmp.lt.s32.totalorder %s9, 2
    // Predicated region
    $region13: #{encoder_forward.11} parent=5 // pred_check
      %p145 = pneg %p144
    $region14: #{encoder_forward.11} parent=5 // pred_check_branch
      %147 = sbr.rel (%p145) target = $region16
    $region15: #{encoder_forward.11} parent=5 // pred_region
      // Predicated region
      $region17: #{encoder_forward.11} parent=15 // pred_check
        %p148 = pneg %p43
      $region18: #{encoder_forward.11} parent=15 // pred_check_branch
        %150 = sbr.rel (%p148) target = $region20
      $region19: #{encoder_forward.11} parent=15 // pred_region
        %p151 = scmp.lt.s32.totalorder %s16, 1
        %s152 = scalar_select %p151, %s16, 1
        %p153 = scmp.lt.s32.totalorder %s17, 0
        %s154 = scalar_select %p153, %s17, 0
        %s155 = sadd.s32 %s154, %s152
        %s156 = smul.addr %s155, 4
        %s157 = scalar_lea.vmem %s0, %s156
      $region20: #{encoder_forward.11} parent=15 // pred_fallthru
        _
      // Predicated region
      $region21: #{encoder_forward.11} parent=15 // pred_check
        %p158 = pneg %p69
      $region22: #{encoder_forward.11} parent=15 // pred_check_branch
        %160 = sbr.rel (%p158) target = $region24
      $region23: #{encoder_forward.11} parent=15 // pred_region
        %p161 = scmp.lt.s32.totalorder %s16, 1
        %s162 = scalar_select %p161, %s16, 1
        %s163 = smul.addr %s162, 4
        %s164 = scalar_lea.vmem %s1, %s163
      $region24: #{encoder_forward.11} parent=15 // pred_fallthru
        _
      // Predicated region
      $region25: #{encoder_forward.11} parent=15 // pred_check
        %p165 = pneg %p95
      $region26: #{encoder_forward.11} parent=15 // pred_check_branch
        %167 = sbr.rel (%p165) target = $region28
      $region27: #{encoder_forward.11} parent=15 // pred_region
        %p168 = scmp.lt.s32.totalorder %s16, 1
        %s169 = scalar_select %p168, %s16, 1
        %s170 = scalar_lea.vmem %s2, %s169
      $region28: #{encoder_forward.11} parent=15 // pred_fallthru
        _
    $region16: #{encoder_forward.11} parent=5 // pred_fallthru
      _
    %p171 = scmp.le.s32.totalorder 1, %s9
    %p172 = scmp.lt.s32.totalorder %s9, 3
    %p173 = pnand %p171, %p172
    %p174 = pneg %p173
    // Predicated region
    $region29: #{encoder_forward.11} parent=5 // pred_check
      _
    $region30: #{encoder_forward.11} parent=5 // pred_check_branch
      %176 = sbr.rel (%p173) target = $region32
    $region31: #{encoder_forward.11} parent=5 // pred_region
      %s177 = ssub.s32 %s9, 1
      %p178 = scmp.lt.s32.totalorder %s18, 1
      %s179 = scalar_select %p178, %s18, 1
      %p180 = scmp.lt.s32.totalorder %s19, 0
      %s181 = scalar_select %p180, %s19, 0
      %s182 = sadd.s32 %s181, %s179
      %s183 = smul.addr %s182, 4
      %s184 = scalar_lea.vmem %s0, %s183
      %p185 = pneg %p49
      %p186 = pneg %p46
      %p187 = scmp.lt.s32.totalorder %s18, 1
      %s188 = scalar_select %p187, %s18, 1
      %s189 = smul.addr %s188, 4
      %s190 = scalar_lea.vmem %s1, %s189
      %p191 = pneg %p75
      %p192 = pneg %p72
      %p193 = scmp.lt.s32.totalorder %s18, 1
      %s194 = scalar_select %p193, %s18, 1
      %s195 = scalar_lea.vmem %s2, %s194
      %p196 = pneg %p101
      %p197 = pneg %p98
      %p198 = pneg %p129
      %p199 = pneg %p126
      %p200 = scmp.lt.s32.totalorder %s18, 1
      %s201 = scalar_select %p200, %s18, 1
      %p202 = scmp.lt.s32.totalorder %s19, 0
      %s203 = scalar_select %p202, %s19, 0
      %s204 = sadd.s32 %s203, %s201
      %s205 = smul.addr %s204, 4
      %s206 = scalar_lea.vmem %s3, %s205
      %p207 = scmp.lt.s32.totalorder %s18, 1
      %s208 = scalar_select %p207, %s18, 1
      %p209 = scmp.lt.s32.totalorder %s19, 0
      %s210 = scalar_select %p209, %s19, 0
      %s211 = sadd.s32 %s210, %s208
      %s212 = smul.addr %s211, 4
      %s213 = scalar_lea.vmem %s0, %s212
      %p214 = scmp.lt.s32.totalorder %s18, 1
      %s215 = scalar_select %p214, %s18, 1
      %s216 = smul.addr %s215, 4
      %s217 = scalar_lea.vmem %s1, %s216
      %p218 = scmp.lt.s32.totalorder %s18, 1
      %s219 = scalar_select %p218, %s18, 1
      %s220 = scalar_lea.vmem %s2, %s219
      %p221 = scmp.lt.s32.totalorder %s18, 1
      %s222 = scalar_select %p221, %s18, 1
      %p223 = scmp.lt.s32.totalorder %s19, 0
      %s224 = scalar_select %p223, %s19, 0
      %s225 = sadd.s32 %s224, %s222
      %s226 = smul.addr %s225, 4
      %s227 = scalar_lea.vmem %s3, %s226
      %v229 = vld [vmem:[%s220] sm:$0x1]
      %vm230 = vcmp.eq.f32.partialorder %v229, 0.0
      %v231 = vsel %vm230, -1e+09, 0.0
      %v233 = vlaneseq
      %v234 = vshrl.u32 %v233, 7
      %v235 = vsub.s32 0, %v234
      %v236 = vrot.slane %v231, %v235
      %v238 = vld [vmem:[%s213] sm:$0xf]
      %v239 = vld [vmem:[%s217] sm:$0xf]
      %v241 = vunpack.c.l.b16 %v239
      %v242 = vpack.c.b16 %v241, %v241
      %243 = vrot.lane.b32.xlu0 %v242, 96
      %v244 = vpop.permute.xlu0 %243
      %vm245 = vcmask 64512
      %v247 = vsel %vm245, %v238, 0
      %v250 = vsel %vm245, %v244, 0
      %252 = vmatprep.subr.bf16.mxu0 0
      %253 = vmatpush1.bf16.xpose.msra.mxu0 %v250
      %254 = vmatprep.subr.bf16.mxu0 0
      %255 = vmatpush1.bf16.xpose.msra.mxu0 0
      %256 = vmatprep.subr.bf16.mxu0 0
      %257 = vmatpush1.bf16.xpose.msra.mxu0 0
      %258 = vmatprep.subr.bf16.mxu0 0
      %259 = vmatpush1.bf16.xpose.msra.mxu0 0
      %260 = vmatprep.subr.bf16.mxu0 0
      %261 = vmatpush1.bf16.xpose.msra.mxu0 0
      %262 = vmatprep.subr.bf16.mxu0 0
      %263 = vmatpush1.bf16.xpose.msra.mxu0 0
      %264 = vmatprep.subr.bf16.mxu0 0
      %265 = vmatpush1.bf16.xpose.msra.mxu0 0
      %266 = vmatprep.subr.bf16.mxu0 0
      %267 = vmatpush1.bf16.xpose.msra.mxu0 0
      %268 = vmatprep.subr.bf16.mxu0 0
      %269 = vmatpush1.bf16.xpose.msra.mxu0 0
      %270 = vmatprep.subr.bf16.mxu0 0
      %271 = vmatpush1.bf16.xpose.msra.mxu0 0
      %272 = vmatprep.subr.bf16.mxu0 0
      %273 = vmatpush1.bf16.xpose.msra.mxu0 0
      %274 = vmatprep.subr.bf16.mxu0 0
      %275 = vmatpush1.bf16.xpose.msra.mxu0 0
      %276 = vmatprep.subr.bf16.mxu0 0
      %277 = vmatpush1.bf16.xpose.msra.mxu0 0
      %278 = vmatprep.subr.bf16.mxu0 0
      %279 = vmatpush1.bf16.xpose.msra.mxu0 0
      %280 = vmatprep.subr.bf16.mxu0 0
      %281 = vmatpush1.bf16.xpose.msra.mxu0 0
      %282 = vmatprep.subr.bf16.mxu0 0
      %283 = vmatpush1.bf16.xpose.msra.mxu0 0
      %284 = vmatprep.mubr.bf16.mxu0 0
      %285 = vmatmul.mubr.bf16.gmra.mrb[0].mxu0 %v247
      %v286 = vpop.f32.mrb[0].mxu0
      %v287 = vadd.f32 0.0, %v286
      %v288 = vpop.f32.mrb[0].mxu0
      %v289 = vpop.f32.mrb[0].mxu0
      %v290 = vpop.f32.mrb[0].mxu0
      %291 = vdwg.mxu0
      %v292 = vmul.f32 %v287, 0.35355338
      %v293 = vadd.f32 %v292, %v236
      %v294 = vsel %vm245, %v293, -inf
      %295 = vmax.xlane.f32.xlu0 %v294
      %v296 = vpop.xlane.xlu0 %295
      %v297 = vsub.f32 %v293, %v296
      %v298 = vmul.f32 %v297, 1.442695
      %v299 = vpow.pop %v298
      %v300 = vsel %vm245, %v299, 0.0
      %301 = vadd.xlane.f32.xlu0 %v300
      %v302 = vpop.xlane.xlu0 %301
      %v303 = vrcp.pop %v302
      %v304 = vmul.f32 %v299, %v303
      %v305 = vpack.c.bf16 %v304, %v304
      %306 = vrot.lane.b32.xlu0 %v242, 64
      %v307 = vpop.permute.xlu0 %306
      %v309 = vsel %vm245, %v305, 0
      %vm311 = vcmask 1043456
      %v313 = vsel %vm311, %v307, 0
      %315 = vmatprep.subr.bf16.mxu0 0
      %316 = vmatpush1.bf16.msra.mxu0 %v313
      %317 = vmatprep.subr.bf16.mxu0 0
      %318 = vmatpush1.bf16.msra.mxu0 0
      %319 = vmatprep.subr.bf16.mxu0 0
      %320 = vmatpush1.bf16.msra.mxu0 0
      %321 = vmatprep.subr.bf16.mxu0 0
      %322 = vmatpush1.bf16.msra.mxu0 0
      %323 = vmatprep.subr.bf16.mxu0 0
      %324 = vmatpush1.bf16.msra.mxu0 0
      %325 = vmatprep.subr.bf16.mxu0 0
      %326 = vmatpush1.bf16.msra.mxu0 0
      %327 = vmatprep.subr.bf16.mxu0 0
      %328 = vmatpush1.bf16.msra.mxu0 0
      %329 = vmatprep.subr.bf16.mxu0 0
      %330 = vmatpush1.bf16.msra.mxu0 0
      %331 = vmatprep.subr.bf16.mxu0 0
      %332 = vmatpush1.bf16.msra.mxu0 0
      %333 = vmatprep.subr.bf16.mxu0 0
      %334 = vmatpush1.bf16.msra.mxu0 0
      %335 = vmatprep.subr.bf16.mxu0 0
      %336 = vmatpush1.bf16.msra.mxu0 0
      %337 = vmatprep.subr.bf16.mxu0 0
      %338 = vmatpush1.bf16.msra.mxu0 0
      %339 = vmatprep.subr.bf16.mxu0 0
      %340 = vmatpush1.bf16.msra.mxu0 0
      %341 = vmatprep.subr.bf16.mxu0 0
      %342 = vmatpush1.bf16.msra.mxu0 0
      %343 = vmatprep.subr.bf16.mxu0 0
      %344 = vmatpush1.bf16.msra.mxu0 0
      %345 = vmatprep.subr.bf16.mxu0 0
      %346 = vmatpush1.bf16.msra.mxu0 0
      %347 = vmatprep.mubr.bf16.mxu0 0
      %348 = vmatmul.mubr.bf16.gmra.mrb[0].mxu0 %v309
      %v349 = vpop.f32.mrb[0].mxu0
      %v350 = vadd.f32 0.0, %v349
      %v351 = vpop.f32.mrb[0].mxu0
      %v352 = vpop.f32.mrb[0].mxu0
      %v353 = vpop.f32.mrb[0].mxu0
      %354 = vdwg.mxu0
      %v355 = vpack.c.bf16 %v350, %v350
      %vm356 = vcmask 60416
      %357 = vst.msk [vmem:[%s227] sm:$0xf] %vm356, %v355
      %v358 = vld [vmem:[%s213] sm:$0xf]
      %v359 = vld [vmem:[%s217] sm:$0xf]
      %v361 = vunpack.c.l.b16 %v358
      %v362 = vpack.c.b16 %v361, %v361
      %363 = vrot.lane.b32.xlu0 %v362, 120
      %v364 = vpop.permute.xlu0 %363
      %v366 = vunpack.c.l.b16 %v359
      %v367 = vpack.c.b16 %v366, %v366
      %368 = vrot.lane.b32.xlu0 %v367, 88
      %v369 = vpop.permute.xlu0 %368
      %v371 = vsel %vm245, %v364, 0
      %v374 = vsel %vm245, %v369, 0
      %376 = vmatprep.subr.bf16.mxu0 0
      %377 = vmatpush1.bf16.xpose.msra.mxu0 %v374
      %378 = vmatprep.subr.bf16.mxu0 0
      %379 = vmatpush1.bf16.xpose.msra.mxu0 0
      %380 = vmatprep.subr.bf16.mxu0 0
      %381 = vmatpush1.bf16.xpose.msra.mxu0 0
      %382 = vmatprep.subr.bf16.mxu0 0
      %383 = vmatpush1.bf16.xpose.msra.mxu0 0
      %384 = vmatprep.subr.bf16.mxu0 0
      %385 = vmatpush1.bf16.xpose.msra.mxu0 0
      %386 = vmatprep.subr.bf16.mxu0 0
      %387 = vmatpush1.bf16.xpose.msra.mxu0 0
      %388 = vmatprep.subr.bf16.mxu0 0
      %389 = vmatpush1.bf16.xpose.msra.mxu0 0
      %390 = vmatprep.subr.bf16.mxu0 0
      %391 = vmatpush1.bf16.xpose.msra.mxu0 0
      %392 = vmatprep.subr.bf16.mxu0 0
      %393 = vmatpush1.bf16.xpose.msra.mxu0 0
      %394 = vmatprep.subr.bf16.mxu0 0
      %395 = vmatpush1.bf16.xpose.msra.mxu0 0
      %396 = vmatprep.subr.bf16.mxu0 0
      %397 = vmatpush1.bf16.xpose.msra.mxu0 0
      %398 = vmatprep.subr.bf16.mxu0 0
      %399 = vmatpush1.bf16.xpose.msra.mxu0 0
      %400 = vmatprep.subr.bf16.mxu0 0
      %401 = vmatpush1.bf16.xpose.msra.mxu0 0
      %402 = vmatprep.subr.bf16.mxu0 0
      %403 = vmatpush1.bf16.xpose.msra.mxu0 0
      %404 = vmatprep.subr.bf16.mxu0 0
      %405 = vmatpush1.bf16.xpose.msra.mxu0 0
      %406 = vmatprep.subr.bf16.mxu0 0
      %407 = vmatpush1.bf16.xpose.msra.mxu0 0
      %408 = vmatprep.mubr.bf16.mxu0 0
      %409 = vmatmul.mubr.bf16.gmra.mrb[0].mxu0 %v371
      %v410 = vpop.f32.mrb[0].mxu0
      %v411 = vadd.f32 0.0, %v410
      %v412 = vpop.f32.mrb[0].mxu0
      %v413 = vpop.f32.mrb[0].mxu0
      %v414 = vpop.f32.mrb[0].mxu0
      %415 = vdwg.mxu0
      %v416 = vmul.f32 %v411, 0.35355338
      %v417 = vadd.f32 %v416, %v236
      %v418 = vsel %vm245, %v417, -inf
      %419 = vmax.xlane.f32.xlu0 %v418
      %v420 = vpop.xlane.xlu0 %419
      %v421 = vsub.f32 %v417, %v420
      %v422 = vmul.f32 %v421, 1.442695
      %v423 = vpow.pop %v422
      %v424 = vsel %vm245, %v423, 0.0
      %425 = vadd.xlane.f32.xlu0 %v424
      %v426 = vpop.xlane.xlu0 %425
      %v427 = vrcp.pop %v426
      %v428 = vmul.f32 %v423, %v427
      %v429 = vpack.c.bf16 %v428, %v428
      %430 = vrot.lane.b32.xlu0 %v367, 56
      %v431 = vpop.permute.xlu0 %430
      %v433 = vsel %vm245, %v429, 0
      %v436 = vsel %vm311, %v431, 0
      %438 = vmatprep.subr.bf16.mxu0 0
      %439 = vmatpush1.bf16.msra.mxu0 %v436
      %440 = vmatprep.subr.bf16.mxu0 0
      %441 = vmatpush1.bf16.msra.mxu0 0
      %442 = vmatprep.subr.bf16.mxu0 0
      %443 = vmatpush1.bf16.msra.mxu0 0
      %444 = vmatprep.subr.bf16.mxu0 0
      %445 = vmatpush1.bf16.msra.mxu0 0
      %446 = vmatprep.subr.bf16.mxu0 0
      %447 = vmatpush1.bf16.msra.mxu0 0
      %448 = vmatprep.subr.bf16.mxu0 0
      %449 = vmatpush1.bf16.msra.mxu0 0
      %450 = vmatprep.subr.bf16.mxu0 0
      %451 = vmatpush1.bf16.msra.mxu0 0
      %452 = vmatprep.subr.bf16.mxu0 0
      %453 = vmatpush1.bf16.msra.mxu0 0
      %454 = vmatprep.subr.bf16.mxu0 0
      %455 = vmatpush1.bf16.msra.mxu0 0
      %456 = vmatprep.subr.bf16.mxu0 0
      %457 = vmatpush1.bf16.msra.mxu0 0
      %458 = vmatprep.subr.bf16.mxu0 0
      %459 = vmatpush1.bf16.msra.mxu0 0
      %460 = vmatprep.subr.bf16.mxu0 0
      %461 = vmatpush1.bf16.msra.mxu0 0
      %462 = vmatprep.subr.bf16.mxu0 0
      %463 = vmatpush1.bf16.msra.mxu0 0
      %464 = vmatprep.subr.bf16.mxu0 0
      %465 = vmatpush1.bf16.msra.mxu0 0
      %466 = vmatprep.subr.bf16.mxu0 0
      %467 = vmatpush1.bf16.msra.mxu0 0
      %468 = vmatprep.subr.bf16.mxu0 0
      %469 = vmatpush1.bf16.msra.mxu0 0
      %470 = vmatprep.mubr.bf16.mxu0 0
      %471 = vmatmul.mubr.bf16.gmra.mrb[0].mxu0 %v433
      %v472 = vpop.f32.mrb[0].mxu0
      %v473 = vadd.f32 0.0, %v472
      %v474 = vpop.f32.mrb[0].mxu0
      %v475 = vpop.f32.mrb[0].mxu0
      %v476 = vpop.f32.mrb[0].mxu0
      %477 = vdwg.mxu0
      %v478 = vpack.c.bf16 %v473, %v473
      %v480 = vunpack.c.l.b16 %v478
      %v481 = vpack.c.b16 %v480, %v480
      %482 = vrot.lane.b32.xlu0 %v481, 8
      %v483 = vpop.permute.xlu0 %482
      %vm485 = vcmask 126016
      %486 = vst.msk [vmem:[%s227] sm:$0xf] %vm485, %v483
      %v487 = vld [vmem:[%s213] sm:$0xf]
      %v488 = vld [vmem:[%s217] sm:$0xf]
      %v490 = vunpack.c.l.b16 %v487
      %v491 = vpack.c.b16 %v490, %v490
      %492 = vrot.lane.b32.xlu0 %v491, 112
      %v493 = vpop.permute.xlu0 %492
      %v495 = vunpack.c.l.b16 %v488
      %v496 = vpack.c.b16 %v495, %v495
      %497 = vrot.lane.b32.xlu0 %v496, 80
      %v498 = vpop.permute.xlu0 %497
      %v500 = vsel %vm245, %v493, 0
      %v503 = vsel %vm245, %v498, 0
      %505 = vmatprep.subr.bf16.mxu0 0
      %506 = vmatpush1.bf16.xpose.msra.mxu0 %v503
      %507 = vmatprep.subr.bf16.mxu0 0
      %508 = vmatpush1.bf16.xpose.msra.mxu0 0
      %509 = vmatprep.subr.bf16.mxu0 0
      %510 = vmatpush1.bf16.xpose.msra.mxu0 0
      %511 = vmatprep.subr.bf16.mxu0 0
      %512 = vmatpush1.bf16.xpose.msra.mxu0 0
      %513 = vmatprep.subr.bf16.mxu0 0
      %514 = vmatpush1.bf16.xpose.msra.mxu0 0
      %515 = vmatprep.subr.bf16.mxu0 0
      %516 = vmatpush1.bf16.xpose.msra.mxu0 0
      %517 = vmatprep.subr.bf16.mxu0 0
      %518 = vmatpush1.bf16.xpose.msra.mxu0 0
      %519 = vmatprep.subr.bf16.mxu0 0
      %520 = vmatpush1.bf16.xpose.msra.mxu0 0
      %521 = vmatprep.subr.bf16.mxu0 0
      %522 = vmatpush1.bf16.xpose.msra.mxu0 0
      %523 = vmatprep.subr.bf16.mxu0 0
      %524 = vmatpush1.bf16.xpose.msra.mxu0 0
      %525 = vmatprep.subr.bf16.mxu0 0
      %526 = vmatpush1.bf16.xpose.msra.mxu0 0
      %527 = vmatprep.subr.bf16.mxu0 0
      %528 = vmatpush1.bf16.xpose.msra.mxu0 0
      %529 = vmatprep.subr.bf16.mxu0 0
      %530 = vmatpush1.bf16.xpose.msra.mxu0 0
      %531 = vmatprep.subr.bf16.mxu0 0
      %532 = vmatpush1.bf16.xpose.msra.mxu0 0
      %533 = vmatprep.subr.bf16.mxu0 0
      %534 = vmatpush1.bf16.xpose.msra.mxu0 0
      %535 = vmatprep.subr.bf16.mxu0 0
      %536 = vmatpush1.bf16.xpose.msra.mxu0 0
      %537 = vmatprep.mubr.bf16.mxu0 0
      %538 = vmatmul.mubr.bf16.gmra.mrb[0].mxu0 %v500
      %v539 = vpop.f32.mrb[0].mxu0
      %v540 = vadd.f32 0.0, %v539
      %v541 = vpop.f32.mrb[0].mxu0
      %v542 = vpop.f32.mrb[0].mxu0
      %v543 = vpop.f32.mrb[0].mxu0
      %544 = vdwg.mxu0
      %v545 = vmul.f32 %v540, 0.35355338
      %v546 = vadd.f32 %v545, %v236
      %v547 = vsel %vm245, %v546, -inf
      %548 = vmax.xlane.f32.xlu0 %v547
      %v549 = vpop.xlane.xlu0 %548
      %v550 = vsub.f32 %v546, %v549
      %v551 = vmul.f32 %v550, 1.442695
      %v552 = vpow.pop %v551
      %v553 = vsel %vm245, %v552, 0.0
      %554 = vadd.xlane.f32.xlu0 %v553
      %v555 = vpop.xlane.xlu0 %554
      %v556 = vrcp.pop %v555
      %v557 = vmul.f32 %v552, %v556
      %v558 = vpack.c.bf16 %v557, %v557
      %559 = vrot.lane.b32.xlu0 %v496, 48
      %v560 = vpop.permute.xlu0 %559
      %v562 = vsel %vm245, %v558, 0
      %v565 = vsel %vm311, %v560, 0
      %567 = vmatprep.subr.bf16.mxu0 0
      %568 = vmatpush1.bf16.msra.mxu0 %v565
      %569 = vmatprep.subr.bf16.mxu0 0
      %570 = vmatpush1.bf16.msra.mxu0 0
      %571 = vmatprep.subr.bf16.mxu0 0
      %572 = vmatpush1.bf16.msra.mxu0 0
      %573 = vmatprep.subr.bf16.mxu0 0
      %574 = vmatpush1.bf16.msra.mxu0 0
      %575 = vmatprep.subr.bf16.mxu0 0
      %576 = vmatpush1.bf16.msra.mxu0 0
      %577 = vmatprep.subr.bf16.mxu0 0
      %578 = vmatpush1.bf16.msra.mxu0 0
      %579 = vmatprep.subr.bf16.mxu0 0
      %580 = vmatpush1.bf16.msra.mxu0 0
      %581 = vmatprep.subr.bf16.mxu0 0
      %582 = vmatpush1.bf16.msra.mxu0 0
      %583 = vmatprep.subr.bf16.mxu0 0
      %584 = vmatpush1.bf16.msra.mxu0 0
      %585 = vmatprep.subr.bf16.mxu0 0
      %586 = vmatpush1.bf16.msra.mxu0 0
      %587 = vmatprep.subr.bf16.mxu0 0
      %588 = vmatpush1.bf16.msra.mxu0 0
      %589 = vmatprep.subr.bf16.mxu0 0
      %590 = vmatpush1.bf16.msra.mxu0 0
      %591 = vmatprep.subr.bf16.mxu0 0
      %592 = vmatpush1.bf16.msra.mxu0 0
      %593 = vmatprep.subr.bf16.mxu0 0
      %594 = vmatpush1.bf16.msra.mxu0 0
      %595 = vmatprep.subr.bf16.mxu0 0
      %596 = vmatpush1.bf16.msra.mxu0 0
      %597 = vmatprep.subr.bf16.mxu0 0
      %598 = vmatpush1.bf16.msra.mxu0 0
      %599 = vmatprep.mubr.bf16.mxu0 0
      %600 = vmatmul.mubr.bf16.gmra.mrb[0].mxu0 %v562
      %v601 = vpop.f32.mrb[0].mxu0
      %v602 = vadd.f32 0.0, %v601
      %v603 = vpop.f32.mrb[0].mxu0
      %v604 = vpop.f32.mrb[0].mxu0
      %v605 = vpop.f32.mrb[0].mxu0
      %606 = vdwg.mxu0
      %v607 = vpack.c.bf16 %v602, %v602
      %v609 = vunpack.c.l.b16 %v607
      %v610 = vpack.c.b16 %v609, %v609
      %611 = vrot.lane.b32.xlu0 %v610, 16
      %v612 = vpop.permute.xlu0 %611
      %vm614 = vcmask 191616
      %615 = vst.msk [vmem:[%s227] sm:$0xf] %vm614, %v612
      %v616 = vld [vmem:[%s213] sm:$0xf]
      %v617 = vld [vmem:[%s217] sm:$0xf]
      %v619 = vunpack.c.l.b16 %v616
      %v620 = vpack.c.b16 %v619, %v619
      %621 = vrot.lane.b32.xlu0 %v620, 104
      %v622 = vpop.permute.xlu0 %621
      %v624 = vunpack.c.l.b16 %v617
      %v625 = vpack.c.b16 %v624, %v624
      %626 = vrot.lane.b32.xlu0 %v625, 72
      %v627 = vpop.permute.xlu0 %626
      %v629 = vsel %vm245, %v622, 0
      %v632 = vsel %vm245, %v627, 0
      %634 = vmatprep.subr.bf16.mxu0 0
      %635 = vmatpush1.bf16.xpose.msra.mxu0 %v632
      %636 = vmatprep.subr.bf16.mxu0 0
      %637 = vmatpush1.bf16.xpose.msra.mxu0 0
      %638 = vmatprep.subr.bf16.mxu0 0
      %639 = vmatpush1.bf16.xpose.msra.mxu0 0
      %640 = vmatprep.subr.bf16.mxu0 0
      %641 = vmatpush1.bf16.xpose.msra.mxu0 0
      %642 = vmatprep.subr.bf16.mxu0 0
      %643 = vmatpush1.bf16.xpose.msra.mxu0 0
      %644 = vmatprep.subr.bf16.mxu0 0
      %645 = vmatpush1.bf16.xpose.msra.mxu0 0
      %646 = vmatprep.subr.bf16.mxu0 0
      %647 = vmatpush1.bf16.xpose.msra.mxu0 0
      %648 = vmatprep.subr.bf16.mxu0 0
      %649 = vmatpush1.bf16.xpose.msra.mxu0 0
      %650 = vmatprep.subr.bf16.mxu0 0
      %651 = vmatpush1.bf16.xpose.msra.mxu0 0
      %652 = vmatprep.subr.bf16.mxu0 0
      %653 = vmatpush1.bf16.xpose.msra.mxu0 0
      %654 = vmatprep.subr.bf16.mxu0 0
      %655 = vmatpush1.bf16.xpose.msra.mxu0 0
      %656 = vmatprep.subr.bf16.mxu0 0
      %657 = vmatpush1.bf16.xpose.msra.mxu0 0
      %658 = vmatprep.subr.bf16.mxu0 0
      %659 = vmatpush1.bf16.xpose.msra.mxu0 0
      %660 = vmatprep.subr.bf16.mxu0 0
      %661 = vmatpush1.bf16.xpose.msra.mxu0 0
      %662 = vmatprep.subr.bf16.mxu0 0
      %663 = vmatpush1.bf16.xpose.msra.mxu0 0
      %664 = vmatprep.subr.bf16.mxu0 0
      %665 = vmatpush1.bf16.xpose.msra.mxu0 0
      %666 = vmatprep.mubr.bf16.mxu0 0
      %667 = vmatmul.mubr.bf16.gmra.mrb[0].mxu0 %v629
      %v668 = vpop.f32.mrb[0].mxu0
      %v669 = vadd.f32 0.0, %v668
      %v670 = vpop.f32.mrb[0].mxu0
      %v671 = vpop.f32.mrb[0].mxu0
      %v672 = vpop.f32.mrb[0].mxu0
      %673 = vdwg.mxu0
      %v674 = vmul.f32 %v669, 0.35355338
      %v675 = vadd.f32 %v674, %v236
      %v676 = vsel %vm245, %v675, -inf
      %677 = vmax.xlane.f32.xlu0 %v676
      %v678 = vpop.xlane.xlu0 %677
      %v679 = vsub.f32 %v675, %v678
      %v680 = vmul.f32 %v679, 1.442695
      %v681 = vpow.pop %v680
      %v682 = vsel %vm245, %v681, 0.0
      %683 = vadd.xlane.f32.xlu0 %v682
      %v684 = vpop.xlane.xlu0 %683
      %v685 = vrcp.pop %v684
      %v686 = vmul.f32 %v681, %v685
      %v687 = vpack.c.bf16 %v686, %v686
      %688 = vrot.lane.b32.xlu0 %v625, 40
      %v689 = vpop.permute.xlu0 %688
      %v691 = vsel %vm245, %v687, 0
      %v694 = vsel %vm311, %v689, 0
      %696 = vmatprep.subr.bf16.mxu0 0
      %697 = vmatpush1.bf16.msra.mxu0 %v694
      %698 = vmatprep.subr.bf16.mxu0 0
      %699 = vmatpush1.bf16.msra.mxu0 0
      %700 = vmatprep.subr.bf16.mxu0 0
      %701 = vmatpush1.bf16.msra.mxu0 0
      %702 = vmatprep.subr.bf16.mxu0 0
      %703 = vmatpush1.bf16.msra.mxu0 0
      %704 = vmatprep.subr.bf16.mxu0 0
      %705 = vmatpush1.bf16.msra.mxu0 0
      %706 = vmatprep.subr.bf16.mxu0 0
      %707 = vmatpush1.bf16.msra.mxu0 0
      %708 = vmatprep.subr.bf16.mxu0 0
      %709 = vmatpush1.bf16.msra.mxu0 0
      %710 = vmatprep.subr.bf16.mxu0 0
      %711 = vmatpush1.bf16.msra.mxu0 0
      %712 = vmatprep.subr.bf16.mxu0 0
      %713 = vmatpush1.bf16.msra.mxu0 0
      %714 = vmatprep.subr.bf16.mxu0 0
      %715 = vmatpush1.bf16.msra.mxu0 0
      %716 = vmatprep.subr.bf16.mxu0 0
      %717 = vmatpush1.bf16.msra.mxu0 0
      %718 = vmatprep.subr.bf16.mxu0 0
      %719 = vmatpush1.bf16.msra.mxu0 0
      %720 = vmatprep.subr.bf16.mxu0 0
      %721 = vmatpush1.bf16.msra.mxu0 0
      %722 = vmatprep.subr.bf16.mxu0 0
      %723 = vmatpush1.bf16.msra.mxu0 0
      %724 = vmatprep.subr.bf16.mxu0 0
      %725 = vmatpush1.bf16.msra.mxu0 0
      %726 = vmatprep.subr.bf16.mxu0 0
      %727 = vmatpush1.bf16.msra.mxu0 0
      %728 = vmatprep.mubr.bf16.mxu0 0
      %729 = vmatmul.mubr.bf16.gmra.mrb[0].mxu0 %v691
      %v730 = vpop.f32.mrb[0].mxu0
      %v731 = vadd.f32 0.0, %v730
      %v732 = vpop.f32.mrb[0].mxu0
      %v733 = vpop.f32.mrb[0].mxu0
      %v734 = vpop.f32.mrb[0].mxu0
      %735 = vdwg.mxu0
      %v736 = vpack.c.bf16 %v731, %v731
      %v738 = vunpack.c.l.b16 %v736
      %v739 = vpack.c.b16 %v738, %v738
      %740 = vrot.lane.b32.xlu0 %v739, 24
      %v741 = vpop.permute.xlu0 %740
      %vm743 = vcmask 257216
      %744 = vst.msk [vmem:[%s227] sm:$0xf] %vm743, %v741
      %p745 = scmp.lt.s32.totalorder %s18, 1
      %s746 = scalar_select %p745, %s18, 1
      %p747 = scmp.lt.s32.totalorder %s19, 0
      %s748 = scalar_select %p747, %s19, 0
      %s749 = sadd.s32 %s748, %s746
      %s750 = smul.addr %s749, 4
      %s751 = scalar_lea.vmem %s3, %s750
      // Predicated region
      $region33: #{encoder_forward.11} parent=31 // pred_check
        %p752 = pneg %p126
      $region34: #{encoder_forward.11} parent=31 // pred_check_branch
        %754 = sbr.rel (%p752) target = $region36
      $region35: #{encoder_forward.11} parent=31 // pred_region
        _
      $region36: #{encoder_forward.11} parent=31 // pred_fallthru
        _
    $region32: #{encoder_forward.11} parent=5 // pred_fallthru
      _
    %p755 = scmp.le.s32.totalorder 2, %s9
    // Predicated region
    $region37: #{encoder_forward.11} parent=5 // pred_check
      %p756 = pneg %p755
    $region38: #{encoder_forward.11} parent=5 // pred_check_branch
      %758 = sbr.rel (%p756) target = $region40
    $region39: #{encoder_forward.11} parent=5 // pred_region
      %s759 = ssub.s32 %s9, 2
      // Predicated region
      $region41: #{encoder_forward.11} parent=39 // pred_check
        %p760 = pneg %p132
      $region42: #{encoder_forward.11} parent=39 // pred_check_branch
        %762 = sbr.rel (%p760) target = $region44
      $region43: #{encoder_forward.11} parent=39 // pred_region
        %p763 = scmp.lt.s32.totalorder %s20, 1
        %s764 = scalar_select %p763, %s20, 1
        %p765 = scmp.lt.s32.totalorder %s21, 0
        %s766 = scalar_select %p765, %s21, 0
        %s767 = sadd.s32 %s766, %s764
        %s768 = smul.addr %s767, 4
        %s769 = scalar_lea.vmem %s3, %s768
      $region44: #{encoder_forward.11} parent=39 // pred_fallthru
        _
    $region40: #{encoder_forward.11} parent=5 // pred_fallthru
      _
  $region6: #{encoder_forward.11} parent=0 // loop_footer
    %s13 = sadd.s32 1, %s9
  $region7: #{encoder_forward.11} parent=0 // loop_footer_branch
    %8 = sbr.rel target = $region3
  $region8: #{encoder_forward.11} parent=0 // loop_exit
    _

// kernel: encoder_forward.14
$region0: #{encoder_forward.14}
  #allocation0 [shape = 'u32[]', space=smem, size = 0x4, offset = 0x4, fixed_abs, tag = 'smem constant byte address 0x4 - core index']
  #allocation1 [shape = 'u32[144,128]{1,0:T(1,128)}', space=vmem, size = 0x12000, scoped, tag = 'internal scratch']
  #allocation2 [shape = 'f32[16,32]{1,0:T(8,128)}', space=vmem, size = 0x2000, scoped, tag = 'scratch operand']
  %s0 = inlined_call_operand.vmem [shape: bf16[16,64], index: 0, kind: input, shape index: {}]
  %s1 = inlined_call_operand.vmem [shape: bf16[64,32], index: 1, kind: input, shape index: {}]
  %s2 = inlined_call_operand.vmem [shape: f32[1,32], index: 2, kind: input, shape index: {}]
  %s3 = inlined_call_operand.vmem [shape: f32[16,32], index: 3, kind: input, shape index: {}]
  %s4 = inlined_call_operand.vmem [shape: f32[16,32], index: 4, kind: output, shape index: {}]
  %s5 = sld [smem:[#allocation0]]
  $region34: #{encoder_forward.14} parent=0
    _
  %s7 = ssub.s32 1, %s5
  %s8 = scalar_select 0, %s7, %s5
  // Predicated region
  $region2: #{encoder_forward.14} parent=0 // pred_check
    _
  $region3: #{encoder_forward.14} parent=0 // pred_check_branch
    %10 = sbr.rel (0) target = $region5
  $region4: #{encoder_forward.14} parent=0 // pred_region
    _
  $region5: #{encoder_forward.14} parent=0 // pred_fallthru
    _
  // Predicated region
  $region6: #{encoder_forward.14} parent=0 // pred_check
    _
  $region7: #{encoder_forward.14} parent=0 // pred_check_branch
    %12 = sbr.rel (0) target = $region9
  $region8: #{encoder_forward.14} parent=0 // pred_region
    _
  $region9: #{encoder_forward.14} parent=0 // pred_fallthru
    _
  // Predicated region
  $region10: #{encoder_forward.14} parent=0 // pred_check
    _
  $region11: #{encoder_forward.14} parent=0 // pred_check_branch
    %14 = sbr.rel (0) target = $region13
  $region12: #{encoder_forward.14} parent=0 // pred_region
    _
  $region13: #{encoder_forward.14} parent=0 // pred_fallthru
    _
  // Predicated region
  $region14: #{encoder_forward.14} parent=0 // pred_check
    _
  $region15: #{encoder_forward.14} parent=0 // pred_check_branch
    %16 = sbr.rel (0) target = $region17
  $region16: #{encoder_forward.14} parent=0 // pred_region
    _
  $region17: #{encoder_forward.14} parent=0 // pred_fallthru
    _
  %p18 = scmp.eq.s32.totalorder 0, 0
  // Predicated region
  $region18: #{encoder_forward.14} parent=0 // pred_check
    %p19 = pneg %p18
  $region19: #{encoder_forward.14} parent=0 // pred_check_branch
    %21 = sbr.rel (%p19) target = $region21
  $region20: #{encoder_forward.14} parent=0 // pred_region
    %vm22 = vcmask 261120
    %23 = vst.msk [vmem:[#allocation2] sm:$0xff] %vm22, 0.0
    %24 = vst.msk [vmem:[#allocation2 + $0x8] sm:$0xff] %vm22, 0.0
  $region21: #{encoder_forward.14} parent=0 // pred_fallthru
    _
  %v25 = vld [vmem:[#allocation2] sm:$0xff]
  %v26 = vld [vmem:[#allocation2 + $0x8] sm:$0xff]
  %v27 = vld [vmem:[%s0] sm:$0xf]
  %v28 = vld [vmem:[%s0 + $0x4] sm:$0xf]
  %v29 = vld [vmem:[%s1] sm:$0xf]
  %v30 = vld [vmem:[%s1 + $0x4] sm:$0xf]
  %v31 = vld [vmem:[%s1 + $0x8] sm:$0xf]
  %v32 = vld [vmem:[%s1 + $0xc] sm:$0xf]
  %v33 = vld [vmem:[%s1 + $0x10] sm:$0xf]
  %v34 = vld [vmem:[%s1 + $0x14] sm:$0xf]
  %v35 = vld [vmem:[%s1 + $0x18] sm:$0xf]
  %v36 = vld [vmem:[%s1 + $0x1c] sm:$0xf]
  %v39 = vunpack.c.l.b16 %v27
  %v40 = vunpack.c.l.b16 %v28
  %v41 = vpack.c.b16 %v40, %v39
  %v50 = vunpack.c.l.b16 %v29
  %v51 = vunpack.c.l.b16 %v30
  %v52 = vunpack.c.l.b16 %v31
  %v53 = vunpack.c.l.b16 %v32
  %v54 = vunpack.c.l.b16 %v33
  %v55 = vunpack.c.l.b16 %v34
  %v56 = vunpack.c.l.b16 %v35
  %v57 = vunpack.c.l.b16 %v36
  %v58 = vpack.c.b16 %v51, %v50
  %v59 = vpack.c.b16 %v53, %v52
  %v60 = vpack.c.b16 %v55, %v54
  %v61 = vpack.c.b16 %v57, %v56
  %vm66 = vcmask 523264
  %v68 = vsel %vm66, %v41, 0
  %70 = vmatprep.subr.bf16.mxu0 0
  %71 = vmatpush1.bf16.msra.mxu0 %v58
  %72 = vmatprep.subr.bf16.mxu0 0
  %73 = vmatpush1.bf16.msra.mxu0 %v59
  %74 = vmatprep.subr.bf16.mxu0 0
  %75 = vmatpush1.bf16.msra.mxu0 %v60
  %76 = vmatprep.subr.bf16.mxu0 0
  %77 = vmatpush1.bf16.msra.mxu0 %v61
  %78 = vmatprep.subr.bf16.mxu0 0
  %79 = vmatpush1.bf16.msra.mxu0 0
  %80 = vmatprep.subr.bf16.mxu0 0
  %81 = vmatpush1.bf16.msra.mxu0 0
  %82 = vmatprep.subr.bf16.mxu0 0
  %83 = vmatpush1.bf16.msra.mxu0 0
  %84 = vmatprep.subr.bf16.mxu0 0
  %85 = vmatpush1.bf16.msra.mxu0 0
  %86 = vmatprep.subr.bf16.mxu0 0
  %87 = vmatpush1.bf16.msra.mxu0 0
  %88 = vmatprep.subr.bf16.mxu0 0
  %89 = vmatpush1.bf16.msra.mxu0 0
  %90 = vmatprep.subr.bf16.mxu0 0
  %91 = vmatpush1.bf16.msra.mxu0 0
  %92 = vmatprep.subr.bf16.mxu0 0
  %93 = vmatpush1.bf16.msra.mxu0 0
  %94 = vmatprep.subr.bf16.mxu0 0
  %95 = vmatpush1.bf16.msra.mxu0 0
  %96 = vmatprep.subr.bf16.mxu0 0
  %97 = vmatpush1.bf16.msra.mxu0 0
  %98 = vmatprep.subr.bf16.mxu0 0
  %99 = vmatpush1.bf16.msra.mxu0 0
  %100 = vmatprep.subr.bf16.mxu0 0
  %101 = vmatpush1.bf16.msra.mxu0 0
  %102 = vmatprep.mubr.bf16.mxu0 0
  %103 = vmatmul.mubr.bf16.gmra.mrb[0].mxu0 %v68
  %v104 = vpop.f32.mrb[0].mxu0
  %v105 = vadd.f32 0.0, %v104
  %v106 = vpop.f32.mrb[0].mxu0
  %v107 = vpop.f32.mrb[0].mxu0
  %v108 = vadd.f32 0.0, %v107
  %v109 = vpop.f32.mrb[0].mxu0
  %110 = vdwg.mxu0
  %v111 = vadd.f32 %v25, %v105
  %v112 = vadd.f32 %v26, %v108
  %vm113 = vcmask 261120
  %114 = vst.msk [vmem:[#allocation2] sm:$0xff] %vm113, %v111
  %115 = vst.msk [vmem:[#allocation2 + $0x8] sm:$0xff] %vm113, %v112
  // Predicated region
  $region22: #{encoder_forward.14} parent=0 // pred_check
    %p116 = pneg %p18
  $region23: #{encoder_forward.14} parent=0 // pred_check_branch
    %118 = sbr.rel (%p116) target = $region25
  $region24: #{encoder_forward.14} parent=0 // pred_region
    %v119 = vld [vmem:[#allocation2] sm:$0xff]
    %v120 = vld [vmem:[#allocation2 + $0x8] sm:$0xff]
    %v121 = vld [vmem:[%s2] sm:$0x1]
    %v123 = vlaneseq
    %v124 = vshrl.u32 %v123, 7
    %v125 = vsub.s32 0, %v124
    %v126 = vrot.slane %v121, %v125
    %v128 = vadd.f32 %v119, %v126
    %v129 = vadd.f32 %v120, %v126
    %v130 = vld [vmem:[%s3] sm:$0xff]
    %v131 = vld [vmem:[%s3 + $0x8] sm:$0xff]
    %v132 = vadd.f32 %v128, %v130
    %v133 = vadd.f32 %v129, %v131
    %134 = vst.msk [vmem:[%s4] sm:$0xff] %vm113, %v132
    %135 = vst.msk [vmem:[%s4 + $0x8] sm:$0xff] %vm113, %v133
  $region25: #{encoder_forward.14} parent=0 // pred_fallthru
    _
  // Predicated region
  $region26: #{encoder_forward.14} parent=0 // pred_check
    _
  $region27: #{encoder_forward.14} parent=0 // pred_check_branch
    %137 = sbr.rel (0) target = $region29
  $region28: #{encoder_forward.14} parent=0 // pred_region
    _
  $region29: #{encoder_forward.14} parent=0 // pred_fallthru
    _
  // Predicated region
  $region30: #{encoder_forward.14} parent=0 // pred_check
    _
  $region31: #{encoder_forward.14} parent=0 // pred_check_branch
    %139 = sbr.rel (0) target = $region33
  $region32: #{encoder_forward.14} parent=0 // pred_region
    _
  $region33: #{encoder_forward.14} parent=0 // pred_fallthru
    _

// kernel: encoder_forward.19
$region0: #{encoder_forward.19}
  #allocation0 [shape = 'u32[]', space=smem, size = 0x4, offset = 0x4, fixed_abs, tag = 'smem constant byte address 0x4 - core index']
  #allocation1 [shape = 'u32[144,128]{1,0:T(1,128)}', space=vmem, size = 0x12000, scoped, tag = 'internal scratch']
  #allocation2 [shape = 'f32[16,32]{1,0:T(8,128)}', space=vmem, size = 0x2000, scoped, tag = 'scratch operand']
  %s0 = inlined_call_operand.vmem [shape: bf16[16,64], index: 0, kind: input, shape index: {}]
  %s1 = inlined_call_operand.vmem [shape: bf16[64,32], index: 1, kind: input, shape index: {}]
  %s2 = inlined_call_operand.vmem [shape: f32[1,32], index: 2, kind: input, shape index: {}]
  %s3 = inlined_call_operand.vmem [shape: f32[16,32], index: 3, kind: input, shape index: {}]
  %s4 = inlined_call_operand.vmem [shape: f32[1,32], index: 4, kind: input, shape index: {}]
  %s5 = inlined_call_operand.vmem [shape: f32[1,32], index: 5, kind: input, shape index: {}]
  %s6 = inlined_call_operand.hbm [shape: f32[16,32], index: 6, kind: output, shape index: {}]
  %s7 = sld [smem:[#allocation0]]
  $region42: #{encoder_forward.19} parent=0
    _
  %s9 = ssub.s32 1, %s7
  %s10 = scalar_select 0, %s9, %s7
  $region1: #{encoder_forward.19} parent=0
    #allocation3 [shape = 'u8[8192]{0}', space=vmem, size = 0x2000, scoped, tag = 'output window, operand 0, single buffered']
    #allocation4 [shape = 's32[1]{0}', space=sflag, size = 0x4, scoped, tag = 'scoped memory for encoder_forward.19']
    %11 = vsyncpa [#allocation4], 0
    // Predicated region
    $region2: #{encoder_forward.19} parent=1 // pred_check
      _
    $region3: #{encoder_forward.19} parent=1 // pred_check_branch
      %13 = sbr.rel (0) target = $region5
    $region4: #{encoder_forward.19} parent=1 // pred_region
      _
    $region5: #{encoder_forward.19} parent=1 // pred_fallthru
      _
    // Predicated region
    $region6: #{encoder_forward.19} parent=1 // pred_check
      _
    $region7: #{encoder_forward.19} parent=1 // pred_check_branch
      %15 = sbr.rel (0) target = $region9
    $region8: #{encoder_forward.19} parent=1 // pred_region
      _
    $region9: #{encoder_forward.19} parent=1 // pred_fallthru
      _
    // Predicated region
    $region10: #{encoder_forward.19} parent=1 // pred_check
      _
    $region11: #{encoder_forward.19} parent=1 // pred_check_branch
      %17 = sbr.rel (0) target = $region13
    $region12: #{encoder_forward.19} parent=1 // pred_region
      _
    $region13: #{encoder_forward.19} parent=1 // pred_fallthru
      _
    // Predicated region
    $region14: #{encoder_forward.19} parent=1 // pred_check
      _
    $region15: #{encoder_forward.19} parent=1 // pred_check_branch
      %19 = sbr.rel (0) target = $region17
    $region16: #{encoder_forward.19} parent=1 // pred_region
      _
    $region17: #{encoder_forward.19} parent=1 // pred_fallthru
      _
    // Predicated region
    $region18: #{encoder_forward.19} parent=1 // pred_check
      _
    $region19: #{encoder_forward.19} parent=1 // pred_check_branch
      %21 = sbr.rel (0) target = $region21
    $region20: #{encoder_forward.19} parent=1 // pred_region
      _
    $region21: #{encoder_forward.19} parent=1 // pred_fallthru
      _
    // Predicated region
    $region22: #{encoder_forward.19} parent=1 // pred_check
      _
    $region23: #{encoder_forward.19} parent=1 // pred_check_branch
      %23 = sbr.rel (0) target = $region25
    $region24: #{encoder_forward.19} parent=1 // pred_region
      _
    $region25: #{encoder_forward.19} parent=1 // pred_fallthru
      _
    %p25 = scmp.eq.s32.totalorder 0, 0
    // Predicated region
    $region26: #{encoder_forward.19} parent=1 // pred_check
      %p26 = pneg %p25
    $region27: #{encoder_forward.19} parent=1 // pred_check_branch
      %28 = sbr.rel (%p26) target = $region29
    $region28: #{encoder_forward.19} parent=1 // pred_region
      %vm29 = vcmask 261120
      %30 = vst.msk [vmem:[#allocation2] sm:$0xff] %vm29, 0.0
      %31 = vst.msk [vmem:[#allocation2 + $0x8] sm:$0xff] %vm29, 0.0
    $region29: #{encoder_forward.19} parent=1 // pred_fallthru
      _
    %v32 = vld [vmem:[#allocation2] sm:$0xff]
    %v33 = vld [vmem:[#allocation2 + $0x8] sm:$0xff]
    %v34 = vld [vmem:[%s0] sm:$0xf]
    %v35 = vld [vmem:[%s0 + $0x4] sm:$0xf]
    %v36 = vld [vmem:[%s1] sm:$0xf]
    %v37 = vld [vmem:[%s1 + $0x4] sm:$0xf]
    %v38 = vld [vmem:[%s1 + $0x8] sm:$0xf]
    %v39 = vld [vmem:[%s1 + $0xc] sm:$0xf]
    %v40 = vld [vmem:[%s1 + $0x10] sm:$0xf]
    %v41 = vld [vmem:[%s1 + $0x14] sm:$0xf]
    %v42 = vld [vmem:[%s1 + $0x18] sm:$0xf]
    %v43 = vld [vmem:[%s1 + $0x1c] sm:$0xf]
    %v46 = vunpack.c.l.b16 %v34
    %v47 = vunpack.c.l.b16 %v35
    %v48 = vpack.c.b16 %v47, %v46
    %v57 = vunpack.c.l.b16 %v36
    %v58 = vunpack.c.l.b16 %v37
    %v59 = vunpack.c.l.b16 %v38
    %v60 = vunpack.c.l.b16 %v39
    %v61 = vunpack.c.l.b16 %v40
    %v62 = vunpack.c.l.b16 %v41
    %v63 = vunpack.c.l.b16 %v42
    %v64 = vunpack.c.l.b16 %v43
    %v65 = vpack.c.b16 %v58, %v57
    %v66 = vpack.c.b16 %v60, %v59
    %v67 = vpack.c.b16 %v62, %v61
    %v68 = vpack.c.b16 %v64, %v63
    %vm73 = vcmask 523264
    %v75 = vsel %vm73, %v48, 0
    %77 = vmatprep.subr.bf16.mxu0 0
    %78 = vmatpush1.bf16.msra.mxu0 %v65
    %79 = vmatprep.subr.bf16.mxu0 0
    %80 = vmatpush1.bf16.msra.mxu0 %v66
    %81 = vmatprep.subr.bf16.mxu0 0
    %82 = vmatpush1.bf16.msra.mxu0 %v67
    %83 = vmatprep.subr.bf16.mxu0 0
    %84 = vmatpush1.bf16.msra.mxu0 %v68
    %85 = vmatprep.subr.bf16.mxu0 0
    %86 = vmatpush1.bf16.msra.mxu0 0
    %87 = vmatprep.subr.bf16.mxu0 0
    %88 = vmatpush1.bf16.msra.mxu0 0
    %89 = vmatprep.subr.bf16.mxu0 0
    %90 = vmatpush1.bf16.msra.mxu0 0
    %91 = vmatprep.subr.bf16.mxu0 0
    %92 = vmatpush1.bf16.msra.mxu0 0
    %93 = vmatprep.subr.bf16.mxu0 0
    %94 = vmatpush1.bf16.msra.mxu0 0
    %95 = vmatprep.subr.bf16.mxu0 0
    %96 = vmatpush1.bf16.msra.mxu0 0
    %97 = vmatprep.subr.bf16.mxu0 0
    %98 = vmatpush1.bf16.msra.mxu0 0
    %99 = vmatprep.subr.bf16.mxu0 0
    %100 = vmatpush1.bf16.msra.mxu0 0
    %101 = vmatprep.subr.bf16.mxu0 0
    %102 = vmatpush1.bf16.msra.mxu0 0
    %103 = vmatprep.subr.bf16.mxu0 0
    %104 = vmatpush1.bf16.msra.mxu0 0
    %105 = vmatprep.subr.bf16.mxu0 0
    %106 = vmatpush1.bf16.msra.mxu0 0
    %107 = vmatprep.subr.bf16.mxu0 0
    %108 = vmatpush1.bf16.msra.mxu0 0
    %109 = vmatprep.mubr.bf16.mxu0 0
    %110 = vmatmul.mubr.bf16.gmra.mrb[0].mxu0 %v75
    %v111 = vpop.f32.mrb[0].mxu0
    %v112 = vadd.f32 0.0, %v111
    %v113 = vpop.f32.mrb[0].mxu0
    %v114 = vpop.f32.mrb[0].mxu0
    %v115 = vadd.f32 0.0, %v114
    %v116 = vpop.f32.mrb[0].mxu0
    %117 = vdwg.mxu0
    %v118 = vadd.f32 %v32, %v112
    %v119 = vadd.f32 %v33, %v115
    %vm120 = vcmask 261120
    %121 = vst.msk [vmem:[#allocation2] sm:$0xff] %vm120, %v118
    %122 = vst.msk [vmem:[#allocation2 + $0x8] sm:$0xff] %vm120, %v119
    // Predicated region
    $region30: #{encoder_forward.19} parent=1 // pred_check
      %p123 = pneg %p25
    $region31: #{encoder_forward.19} parent=1 // pred_check_branch
      %125 = sbr.rel (%p123) target = $region33
    $region32: #{encoder_forward.19} parent=1 // pred_region
      %v126 = vld [vmem:[#allocation2] sm:$0xff]
      %v127 = vld [vmem:[#allocation2 + $0x8] sm:$0xff]
      %v128 = vld [vmem:[%s2] sm:$0x1]
      %v130 = vlaneseq
      %v131 = vshrl.u32 %v130, 7
      %v132 = vsub.s32 0, %v131
      %v133 = vrot.slane %v128, %v132
      %v135 = vadd.f32 %v126, %v133
      %v136 = vadd.f32 %v127, %v133
      %v137 = vld [vmem:[%s3] sm:$0xff]
      %v138 = vld [vmem:[%s3 + $0x8] sm:$0xff]
      %v139 = vadd.f32 %v135, %v137
      %v140 = vadd.f32 %v136, %v138
      %v141 = vsel %vm120, %v139, 0.0
      %142 = vadd.xlane.f32.xlu0 %v141
      %v143 = vpop.xlane.xlu0 %142
      %v144 = vsel %vm120, %v140, 0.0
      %145 = vadd.xlane.f32.xlu0 %v144
      %v146 = vpop.xlane.xlu0 %145
      %v147 = vrcp.pop 32.0
      %v148 = vmul.f32 %v143, %v147
      %v149 = vmul.f32 %v146, %v147
      %v150 = vsub.f32 %v139, %v148
      %v151 = vsub.f32 %v140, %v149
      %v152 = vmul.f32 %v150, %v150
      %v153 = vmul.f32 %v151, %v151
      %v154 = vsel %vm120, %v152, 0.0
      %155 = vadd.xlane.f32.xlu0 %v154
      %v156 = vpop.xlane.xlu0 %155
      %v157 = vsel %vm120, %v153, 0.0
      %158 = vadd.xlane.f32.xlu0 %v157
      %v159 = vpop.xlane.xlu0 %158
      %v160 = vmul.f32 %v156, 0.032258064
      %v161 = vmul.f32 %v159, 0.032258064
      %v162 = vrsqrt.pop %v160
      %v163 = vmul.f32 %v160, %v162
      %vm164 = vcmp.eq.f32.partialorder %v160, inf
      %v165 = vsel %vm164, %v160, %v163
      %vm166 = vcmp.eq.f32.partialorder %v160, 0.0
      %v167 = vand.u32 %v160, 2147483648
      %v168 = vsel %vm166, %v167, %v165
      %v169 = vrsqrt.pop %v161
      %v170 = vmul.f32 %v161, %v169
      %vm171 = vcmp.eq.f32.partialorder %v161, inf
      %v172 = vsel %vm171, %v161, %v170
      %vm173 = vcmp.eq.f32.partialorder %v161, 0.0
      %v174 = vand.u32 %v161, 2147483648
      %v175 = vsel %vm173, %v174, %v172
      %v176 = vld [vmem:[%s4] sm:$0x1]
      %v178 = vlaneseq
      %v179 = vshrl.u32 %v178, 7
      %v180 = vsub.s32 0, %v179
      %v181 = vrot.slane %v176, %v180
      %v183 = vmul.f32 %v181, %v150
      %v184 = vmul.f32 %v181, %v151
      %v185 = vadd.f32 %v168, 1e-06
      %v186 = vadd.f32 %v175, 1e-06
      %v187 = vrcp.pop %v185
      %v188 = vmul.f32 %v183, %v187
      %v189 = vrcp.pop %v186
      %v190 = vmul.f32 %v184, %v189
      %v191 = vld [vmem:[%s5] sm:$0x1]
      %v193 = vlaneseq
      %v194 = vshrl.u32 %v193, 7
      %v195 = vsub.s32 0, %v194
      %v196 = vrot.slane %v191, %v195
      %v198 = vadd.f32 %v188, %v196
      %v199 = vadd.f32 %v190, %v196
      %200 = vst.msk [vmem:[#allocation3] sm:$0xff] %vm120, %v198
      %201 = vst.msk [vmem:[#allocation3 + $0x8] sm:$0xff] %vm120, %v199
    $region33: #{encoder_forward.19} parent=1 // pred_fallthru
      _
    // Predicated region
    $region34: #{encoder_forward.19} parent=1 // pred_check
      _
    $region35: #{encoder_forward.19} parent=1 // pred_check_branch
      %203 = sbr.rel (0) target = $region37
    $region36: #{encoder_forward.19} parent=1 // pred_region
      %s205 = ssub.s32 256, 256
      %206 = vsyncadd [#allocation4], %s205
      %s207 = sshll.u32 [#allocation3], 4
      %s208 = int_to_ptr.vmem [resolvable:$true] %s207
      %213 = dma.vmem_to_hbm [thread:$0]  %s208, 256, %s6, [#allocation4], 128, 128, 8
    $region37: #{encoder_forward.19} parent=1 // pred_fallthru
      _
    // Predicated region
    $region38: #{encoder_forward.19} parent=1 // pred_check
      _
    $region39: #{encoder_forward.19} parent=1 // pred_check_branch
      %215 = sbr.rel (0) target = $region41
    $region40: #{encoder_forward.19} parent=1 // pred_region
      %216 = dma.done [#allocation4], 256
    $region41: #{encoder_forward.19} parent=1 // pred_fallthru
      _
    %217 = vsyncpa [#allocation4], 1

</llo_original>
